<compile_context>
chip_gen: v5e
topology: v5e:2x2
jax: 0.10.0
libtpu: 0.0.40
codegen_flags: <defaults>
</compile_context>

<pallas_src>
import functools

import jax
import jax.numpy as jnp
from jax.experimental import pallas as pl
from jax.experimental.pallas import tpu as pltpu

BN_EPS = 1e-5
NORM_EPS = 1e-12
_INV_SQRT2 = 0.7071067811865476


def _gelu(x, use_tanh):
    if use_tanh:
        # tanh approximation rides the EUP slot (frees the saturated VALU slot
        # on v6e/v7x).  Not bit-identical to PyTorch's default -> gated.
        return jax.nn.gelu(x, approximate=True)
    # PyTorch nn.GELU() default: exact erf formulation.
    return 0.5 * x * (1.0 + jax.lax.erf(x * _INV_SQRT2))


def _bn_train(x):
    # BatchNorm1d, training mode, module-init state (gamma=1, beta=0),
    # biased variance over the batch axis.  Per-feature over the batch, so
    # feature-dim tiling preserves semantics exactly.
    mean = jnp.mean(x, axis=0, keepdims=True)
    xc = x - mean
    var = jnp.mean(xc * xc, axis=0, keepdims=True)
    return xc * jax.lax.rsqrt(var + BN_EPS)


# --------------------------------------------------------------------------
# Kernel 1: MLP, streamed over hidden-dim tiles (reduction grid)
# --------------------------------------------------------------------------
def _mlp_kernel(x_ref, w1_ref, b1_ref, w2_ref, b2_ref, w3_ref, b3_ref,
                z_ref, acc_ref, *, use_tanh_gelu):
    j = pl.program_id(0)

    @pl.when(j == 0)
    def _():
        acc_ref[...] = jnp.zeros_like(acc_ref)

    # Layer 1 for this hidden-feature tile: [B, th]
    h1 = jnp.dot(x_ref[...], w1_ref[...],
                 preferred_element_type=jnp.float32) + b1_ref[...]
    g1 = _gelu(_bn_train(h1), use_tanh_gelu)

    # Layer-2 partial product accumulated across hidden tiles: [B, hidden]
    acc_ref[...] += jnp.dot(g1.astype(jnp.bfloat16), w2_ref[...],
                            preferred_element_type=jnp.float32)

    @pl.when(j == pl.num_programs(0) - 1)
    def _():
        h2 = acc_ref[...] + b2_ref[...]
        g2 = _gelu(_bn_train(h2), use_tanh_gelu)
        z = jnp.dot(g2.astype(jnp.bfloat16), w3_ref[...],
                    preferred_element_type=jnp.float32) + b3_ref[...]
        # F.normalize(z, dim=-1): z / max(||z||, eps)
        sumsq = jnp.sum(z * z, axis=-1, keepdims=True)
        inv = jax.lax.rsqrt(jnp.maximum(sumsq, NORM_EPS * NORM_EPS))
        z_ref[...] = (z * inv).astype(z_ref.dtype)


# --------------------------------------------------------------------------
# Kernel 2: weight-normed last layer, tiled over out_dim ("parallel")
# --------------------------------------------------------------------------
def _last_layer_kernel(z_ref, wl_ref, cinv_ref, o_ref):
    acc = jnp.dot(z_ref[...], wl_ref[...], preferred_element_type=jnp.float32)
    o_ref[...] = (acc * cinv_ref[...]).astype(o_ref.dtype)


# --------------------------------------------------------------------------
# Generation / batch aware tile planning
# --------------------------------------------------------------------------
def _vmem_budget_bytes():
    cap = 64 * 1024 * 1024  # conservative default (v7x per-TC physical VMEM)
    try:
        info = pltpu.get_tpu_info()
        cap = int(getattr(info, "vmem_capacity_bytes", cap))
    except Exception:
        pass
    # ~25% headroom for compiler scratch / semaphores / pipeline slack:
    # ~96 MiB on v5e/v6e (128 MiB physical), ~48 MiB on v7x (64 MiB).
    return (cap * 3) // 4


def _pick_block_h(in_dim, hidden, bottleneck, batch, budget):
    resident = (batch * in_dim * 2            # x (bf16, resident)
                + batch * hidden * 4          # layer-2 accumulator (f32 scratch)
                + 2 * batch * bottleneck * 2  # z output (bf16)
                + hidden * bottleneck * 2     # W3 (bf16, resident)
                + hidden * 4 + bottleneck * 4)  # b2, b3
    for cand in (1024, 512, 256, 128):
        if hidden % cand:
            continue
        streamed = 2 * (in_dim * cand * 2 + cand * hidden * 2 + cand * 4)
        if resident + streamed <= budget:
            return cand
    return 128 if hidden % 128 == 0 else hidden


def _pick_block_n(out_dim, bottleneck, batch, budget, out_itemsize=2):
    resident = batch * bottleneck * 2  # z (bf16, resident)
    for cand in (8192, 4096, 2048, 1024, 512, 256, 128):
        if out_dim % cand:
            continue
        streamed = 2 * (bottleneck * cand * 2      # bf16 weight tile (x2 bufs)
                        + batch * cand * out_itemsize  # output tile (x2 bufs)
                        + cand * 4)                # col_inv tile
        if resident + streamed <= budget:
            return cand
    return 128 if out_dim % 128 == 0 else out_dim


# --------------------------------------------------------------------------
# Forward
# --------------------------------------------------------------------------
@functools.partial(jax.jit,
                   static_argnames=("block_h", "block_n", "use_tanh_gelu"))
def dino_head_forward(x, params, block_h=None, block_n=None,
                      use_tanh_gelu=False):
    """x: [B, in_dim] float.  Returns [B, out_dim] bf16 (downstream softmax/CE
    should consume bf16 or be fused; halves the HBM writeback of kernel 2)."""
    w1, b1, w2, b2, w3, b3, wl, col_inv = params
    B = x.shape[0]
    in_dim, hidden = w1.shape
    bottleneck, out_dim = wl.shape
    budget = _vmem_budget_bytes()

    # Matmul consumes bf16 anyway; ideally the backbone already emits bf16.
    x = x.astype(jnp.bfloat16)

    if block_h is None:
        block_h = _pick_block_h(in_dim, hidden, bottleneck, B, budget)
    assert hidden % block_h == 0, "hidden_dim must be a multiple of block_h"

    z = pl.pallas_call(
        functools.partial(_mlp_kernel, use_tanh_gelu=use_tanh_gelu),
        out_shape=jax.ShapeDtypeStruct((B, bottleneck), jnp.bfloat16),
        grid=(hidden // block_h,),
        in_specs=[
            pl.BlockSpec((B, in_dim), lambda j: (0, 0)),            # x (resident)
            pl.BlockSpec((in_dim, block_h), lambda j: (0, j)),      # W1 col tile
            pl.BlockSpec((1, block_h), lambda j: (0, j)),           # b1 tile
            pl.BlockSpec((block_h, hidden), lambda j: (j, 0)),      # W2 row tile
            pl.BlockSpec((1, hidden), lambda j: (0, 0)),            # b2
            pl.BlockSpec((hidden, bottleneck), lambda j: (0, 0)),   # W3 (resident)
            pl.BlockSpec((1, bottleneck), lambda j: (0, 0)),        # b3
        ],
        out_specs=pl.BlockSpec((B, bottleneck), lambda j: (0, 0)),
        scratch_shapes=[pltpu.VMEM((B, hidden), jnp.float32)],
        compiler_params=pltpu.CompilerParams(
            dimension_semantics=("arbitrary",),
            vmem_limit_bytes=budget,
        ),
    )(x, w1, b1, w2, b2, w3, b3)

    if block_n is None:
        block_n = _pick_block_n(out_dim, bottleneck, B, budget)
    assert out_dim % block_n == 0, "out_dim must be a multiple of block_n"

    out = pl.pallas_call(
        _last_layer_kernel,
        out_shape=jax.ShapeDtypeStruct((B, out_dim), jnp.bfloat16),
        grid=(out_dim // block_n,),
        in_specs=[
            pl.BlockSpec((B, bottleneck), lambda j: (0, 0)),         # z (resident)
            pl.BlockSpec((bottleneck, block_n), lambda j: (0, j)),   # weight tile
            pl.BlockSpec((1, block_n), lambda j: (0, j)),            # col_inv tile
        ],
        out_specs=pl.BlockSpec((B, block_n), lambda j: (0, j)),
        compiler_params=pltpu.CompilerParams(
            dimension_semantics=("parallel",),
            vmem_limit_bytes=budget,
        ),
    )(z, wl, col_inv)
    return out


# --------------------------------------------------------------------------
# Parameter init (matches the PyTorch module's init) and pure-JAX reference
# --------------------------------------------------------------------------
def _trunc_normal(key, shape, std=0.02):
    return std * jax.random.truncated_normal(key, -2.0, 2.0, shape, jnp.float32)


def init_params(key, in_dim, hidden_dim, bottleneck_dim, out_dim):
    ks = jax.random.split(key, 4)
    # Linear weights are PyTorch-layout [out, in] at init; stored pre-transposed
    # [in, out] and pre-cast to bf16 (no per-call transpose/cast in HBM).
    w1 = _trunc_normal(ks[0], (hidden_dim, in_dim)).T.astype(jnp.bfloat16)
    b1 = jnp.zeros((1, hidden_dim), jnp.float32)
    w2 = _trunc_normal(ks[1], (hidden_dim, hidden_dim)).T.astype(jnp.bfloat16)
    b2 = jnp.zeros((1, hidden_dim), jnp.float32)
    w3 = _trunc_normal(ks[2], (bottleneck_dim, hidden_dim)).T.astype(jnp.bfloat16)
    b3 = jnp.zeros((1, bottleneck_dim), jnp.float32)
    # last_layer weight_v: default nn.Linear init ~ U(-1/sqrt(fan_in), ...)
    bound = 1.0 / float(bottleneck_dim) ** 0.5
    wl_v = jax.random.uniform(ks[3], (out_dim, bottleneck_dim), jnp.float32,
                              -bound, bound)
    # weight_norm with g == 1: w = v / ||v||_row.  Precompute 1/||v|| ONCE in
    # f32 (matches PyTorch's f32 norm; no per-tile recompute inside kernel 2).
    col_inv = jax.lax.rsqrt(
        jnp.maximum(jnp.sum(wl_v * wl_v, axis=1), NORM_EPS * NORM_EPS)
    ).reshape(1, out_dim).astype(jnp.float32)
    wl = wl_v.T.astype(jnp.bfloat16)               # [bottleneck, out]
    return (w1, b1, w2, b2, w3, b3, wl, col_inv)


def reference_forward(x, params, use_tanh_gelu=False):
    """Plain-JAX reference mirroring the kernel math (same bf16 casts).
    BatchNorm running-stat buffer updates are intentionally omitted (forward
    output does not depend on them)."""
    w1, b1, w2, b2, w3, b3, wl, col_inv = params
    h = jnp.dot(x.astype(jnp.bfloat16), w1,
                preferred_element_type=jnp.float32) + b1
    h = _gelu(_bn_train(h), use_tanh_gelu)
    h = jnp.dot(h.astype(jnp.bfloat16), w2,
                preferred_element_type=jnp.float32) + b2
    h = _gelu(_bn_train(h), use_tanh_gelu)
    z = jnp.dot(h.astype(jnp.bfloat16), w3,
                preferred_element_type=jnp.float32) + b3
    z = z * jax.lax.rsqrt(jnp.maximum(jnp.sum(z * z, -1, keepdims=True),
                                      NORM_EPS * NORM_EPS))
    z = z.astype(jnp.bfloat16)
    out = jnp.dot(z, wl, preferred_element_type=jnp.float32) * col_inv
    return out.astype(jnp.bfloat16)


if __name__ == "__main__":
    # Small, TPU-friendly shapes (feature dims multiples of 128).  block_h=128
    # exercises the 2-step hidden-streaming reduction grid; block_n=256
    # exercises the 4-step parallel out_dim grid.
    B, IN_DIM, HIDDEN, BOTTLENECK, OUT_DIM = 16, 128, 256, 128, 1024

    key = jax.random.PRNGKey(0)
    kx, kp = jax.random.split(key)
    x = jax.random.normal(kx, (B, IN_DIM), jnp.float32)
    params = init_params(kp, IN_DIM, HIDDEN, BOTTLENECK, OUT_DIM)

    out = dino_head_forward(x, params, block_h=128, block_n=256)
    out = jax.block_until_ready(out)

    ref = reference_forward(x, params)
    assert out.shape == (B, OUT_DIM) and out.dtype == jnp.bfloat16
    err = float(jnp.max(jnp.abs(out.astype(jnp.float32) - ref.astype(jnp.float32))))
    assert err < 2e-2, f"mismatch: max abs err {err}"

    print("KERNEL_OK")
</pallas_src>

<mosaic_0001>
module attributes {stable_mosaic.version = 11 : i64} {
  func.func @_last_layer_kernel(%arg0: i32, %arg1: memref<16x128xbf16, #tpu.memory_space<vmem>>, %arg2: memref<128x256xbf16, #tpu.memory_space<vmem>>, %arg3: memref<1x256xf32, #tpu.memory_space<vmem>>, %arg4: memref<16x256xbf16, #tpu.memory_space<vmem>>) attributes {dimension_semantics = [#tpu.dimension_semantics<parallel>], iteration_bounds = array<i64: 4>, scalar_prefetch = 0 : i64, scratch_operands = 0 : i64, tpu.core_type = #tpu.core_type<tc>, window_params = [{pipeline_mode = #tpu.pipeline_mode<synchronous>, transform_indices = @transform_0, window_bounds = array<i64: 16, 128>}, {transform_indices = @transform_1, window_bounds = array<i64: 128, 256>}, {transform_indices = @transform_2, window_bounds = array<i64: 1, 256>}, {transform_indices = @transform_3, window_bounds = array<i64: 16, 256>}]} {
    %c0 = arith.constant 0 : index
    %c0_0 = arith.constant 0 : index
    %0 = vector.load %arg1[%c0, %c0_0] : memref<16x128xbf16, #tpu.memory_space<vmem>>, vector<16x128xbf16>
    %c0_1 = arith.constant 0 : index
    %c0_2 = arith.constant 0 : index
    %1 = vector.load %arg2[%c0_1, %c0_2] : memref<128x256xbf16, #tpu.memory_space<vmem>>, vector<128x256xbf16>
    %cst = arith.constant dense<0.000000e+00> : vector<16x256xf32>
    %2 = tpu.matmul %0, %1, %cst {dimension_numbers = #tpu.dot_dimension_numbers<[1], [0], [0], [1], [0, 0, 1, 1], [], []>} : vector<16x128xbf16>, vector<128x256xbf16>, vector<16x256xf32> -> vector<16x256xf32>
    %c0_3 = arith.constant 0 : index
    %c0_4 = arith.constant 0 : index
    %3 = vector.load %arg3[%c0_3, %c0_4] : memref<1x256xf32, #tpu.memory_space<vmem>>, vector<1x256xf32>
    %4 = vector.broadcast %3 : vector<1x256xf32> to vector<16x256xf32>
    %5 = arith.mulf %2, %4 : vector<16x256xf32>
    %6 = arith.truncf %5 : vector<16x256xf32> to vector<16x256xbf16>
    %c0_5 = arith.constant 0 : index
    %c0_6 = arith.constant 0 : index
    %7 = vector.load %arg4[%c0_5, %c0_6] : memref<16x256xbf16, #tpu.memory_space<vmem>>, vector<16x256xbf16>
    tpu.vector_store %arg4[%c0_5, %c0_6], %6 {strides = array<i32>} : memref<16x256xbf16, #tpu.memory_space<vmem>>, vector<16x256xbf16>,
    return
  }
  func.func @transform_0(%arg0: i32) -> (i32, i32) {
    %c0_i32 = arith.constant 0 : i32
    %c0_i32_0 = arith.constant 0 : i32
    %c0_i32_1 = arith.constant 0 : i32
    return %c0_i32, %c0_i32_0 : i32, i32
  }
  func.func @transform_1(%arg0: i32) -> (i32, i32) {
    %c0_i32 = arith.constant 0 : i32
    %c0_i32_0 = arith.constant 0 : i32
    return %c0_i32, %arg0 : i32, i32
  }
  func.func @transform_2(%arg0: i32) -> (i32, i32) {
    %c0_i32 = arith.constant 0 : i32
    %c0_i32_0 = arith.constant 0 : i32
    return %c0_i32, %arg0 : i32, i32
  }
  func.func @transform_3(%arg0: i32) -> (i32, i32) {
    %c0_i32 = arith.constant 0 : i32
    %c0_i32_0 = arith.constant 0 : i32
    return %c0_i32, %arg0 : i32, i32
  }
}

module attributes {stable_mosaic.version = 11 : i64} {
  func.func @_mlp_kernel(%arg0: i32, %arg1: memref<16x128xbf16, #tpu.memory_space<vmem>>, %arg2: memref<128x128xbf16, #tpu.memory_space<vmem>>, %arg3: memref<1x128xf32, #tpu.memory_space<vmem>>, %arg4: memref<128x256xbf16, #tpu.memory_space<vmem>>, %arg5: memref<1x256xf32, #tpu.memory_space<vmem>>, %arg6: memref<256x128xbf16, #tpu.memory_space<vmem>>, %arg7: memref<1x128xf32, #tpu.memory_space<vmem>>, %arg8: memref<16x128xbf16, #tpu.memory_space<vmem>>, %arg9: memref<16x256xf32, #tpu.memory_space<vmem>>) attributes {dimension_semantics = [#tpu.dimension_semantics<arbitrary>], iteration_bounds = array<i64: 2>, scalar_prefetch = 0 : i64, scratch_operands = 1 : i64, tpu.core_type = #tpu.core_type<tc>, window_params = [{pipeline_mode = #tpu.pipeline_mode<synchronous>, transform_indices = @transform_0, window_bounds = array<i64: 16, 128>}, {transform_indices = @transform_1, window_bounds = array<i64: 128, 128>}, {transform_indices = @transform_2, window_bounds = array<i64: 1, 128>}, {transform_indices = @transform_3, window_bounds = array<i64: 128, 256>}, {pipeline_mode = #tpu.pipeline_mode<synchronous>, transform_indices = @transform_4, window_bounds = array<i64: 1, 256>}, {pipeline_mode = #tpu.pipeline_mode<synchronous>, transform_indices = @transform_5, window_bounds = array<i64: 256, 128>}, {pipeline_mode = #tpu.pipeline_mode<synchronous>, transform_indices = @transform_6, window_bounds = array<i64: 1, 128>}, {pipeline_mode = #tpu.pipeline_mode<synchronous>, transform_indices = @transform_7, window_bounds = array<i64: 16, 128>}]} {
    %c0_i32 = arith.constant 0 : i32
    %0 = arith.cmpi eq, %arg0, %c0_i32 : i32
    %1 = arith.extui %0 : i1 to i32
    %c0_i32_0 = arith.constant 0 : i32
    %2 = arith.cmpi ne, %1, %c0_i32_0 : i32
    scf.if %2 {
      %cst_22 = arith.constant 0.000000e+00 : f32
      %42 = vector.broadcast %cst_22 : f32 to vector<16x256xf32>
      %c0_23 = arith.constant 0 : index
      %c0_24 = arith.constant 0 : index
      %43 = vector.load %arg9[%c0_23, %c0_24] : memref<16x256xf32, #tpu.memory_space<vmem>>, vector<16x256xf32>
      tpu.vector_store %arg9[%c0_23, %c0_24], %42 {strides = array<i32>} : memref<16x256xf32, #tpu.memory_space<vmem>>, vector<16x256xf32>,
    } else {
    }
    %c0 = arith.constant 0 : index
    %c0_1 = arith.constant 0 : index
    %3 = vector.load %arg1[%c0, %c0_1] : memref<16x128xbf16, #tpu.memory_space<vmem>>, vector<16x128xbf16>
    %c0_2 = arith.constant 0 : index
    %c0_3 = arith.constant 0 : index
    %4 = vector.load %arg2[%c0_2, %c0_3] : memref<128x128xbf16, #tpu.memory_space<vmem>>, vector<128x128xbf16>
    %cst = arith.constant dense<0.000000e+00> : vector<16x128xf32>
    %5 = tpu.matmul %3, %4, %cst {dimension_numbers = #tpu.dot_dimension_numbers<[1], [0], [0], [1], [0, 0, 1, 1], [], []>} : vector<16x128xbf16>, vector<128x128xbf16>, vector<16x128xf32> -> vector<16x128xf32>
    %c0_4 = arith.constant 0 : index
    %c0_5 = arith.constant 0 : index
    %6 = vector.load %arg3[%c0_4, %c0_5] : memref<1x128xf32, #tpu.memory_space<vmem>>, vector<1x128xf32>
    %7 = vector.broadcast %6 : vector<1x128xf32> to vector<16x128xf32>
    %8 = arith.addf %5, %7 : vector<16x128xf32>
    %cst_6 = arith.constant dense<0.000000e+00> : vector<128xf32>
    %9 = vector.multi_reduction <add>, %8, %cst_6 [0] : vector<16x128xf32> to vector<128xf32>
    %10 = vector.shape_cast %9 : vector<128xf32> to vector<1x128xf32>
    %cst_7 = arith.constant 1.600000e+01 : f32
    %11 = vector.broadcast %cst_7 : f32 to vector<1x128xf32>
    %12 = arith.divf %10, %11 : vector<1x128xf32>
    %13 = vector.broadcast %12 : vector<1x128xf32> to vector<16x128xf32>
    %14 = arith.subf %8, %13 : vector<16x128xf32>
    %15 = arith.mulf %14, %14 : vector<16x128xf32>
    %cst_8 = arith.constant dense<0.000000e+00> : vector<128xf32>
    %16 = vector.multi_reduction <add>, %15, %cst_8 [0] : vector<16x128xf32> to vector<128xf32>
    %17 = vector.shape_cast %16 : vector<128xf32> to vector<1x128xf32>
    %cst_9 = arith.constant 1.600000e+01 : f32
    %18 = vector.broadcast %cst_9 : f32 to vector<1x128xf32>
    %19 = arith.divf %17, %18 : vector<1x128xf32>
    %cst_10 = arith.constant 9.99999974E-6 : f32
    %20 = vector.broadcast %cst_10 : f32 to vector<1x128xf32>
    %21 = arith.addf %19, %20 : vector<1x128xf32>
    %22 = math.rsqrt %21 : vector<1x128xf32>
    %23 = vector.broadcast %22 : vector<1x128xf32> to vector<16x128xf32>
    %24 = arith.mulf %14, %23 : vector<16x128xf32>
    %cst_11 = arith.constant 5.000000e-01 : f32
    %25 = vector.broadcast %cst_11 : f32 to vector<16x128xf32>
    %26 = arith.mulf %25, %24 : vector<16x128xf32>
    %cst_12 = arith.constant 0.707106769 : f32
    %27 = vector.broadcast %cst_12 : f32 to vector<16x128xf32>
    %28 = arith.mulf %24, %27 : vector<16x128xf32>
    %29 = math.erf %28 : vector<16x128xf32>
    %cst_13 = arith.constant 1.000000e+00 : f32
    %30 = vector.broadcast %cst_13 : f32 to vector<16x128xf32>
    %31 = arith.addf %30, %29 : vector<16x128xf32>
    %32 = arith.mulf %26, %31 : vector<16x128xf32>
    %c0_14 = arith.constant 0 : index
    %c0_15 = arith.constant 0 : index
    %33 = vector.load %arg9[%c0_14, %c0_15] : memref<16x256xf32, #tpu.memory_space<vmem>>, vector<16x256xf32>
    %34 = arith.truncf %32 : vector<16x128xf32> to vector<16x128xbf16>
    %c0_16 = arith.constant 0 : index
    %c0_17 = arith.constant 0 : index
    %35 = vector.load %arg4[%c0_16, %c0_17] : memref<128x256xbf16, #tpu.memory_space<vmem>>, vector<128x256xbf16>
    %cst_18 = arith.constant dense<0.000000e+00> : vector<16x256xf32>
    %36 = tpu.matmul %34, %35, %cst_18 {dimension_numbers = #tpu.dot_dimension_numbers<[1], [0], [0], [1], [0, 0, 1, 1], [], []>} : vector<16x128xbf16>, vector<128x256xbf16>, vector<16x256xf32> -> vector<16x256xf32>
    %37 = arith.addf %33, %36 : vector<16x256xf32>
    %c0_19 = arith.constant 0 : index
    %c0_20 = arith.constant 0 : index
    %38 = vector.load %arg9[%c0_19, %c0_20] : memref<16x256xf32, #tpu.memory_space<vmem>>, vector<16x256xf32>
    tpu.vector_store %arg9[%c0_19, %c0_20], %37 {strides = array<i32>} : memref<16x256xf32, #tpu.memory_space<vmem>>, vector<16x256xf32>,
    %c1_i32 = arith.constant 1 : i32
    %39 = arith.cmpi eq, %arg0, %c1_i32 : i32
    %40 = arith.extui %39 : i1 to i32
    %c0_i32_21 = arith.constant 0 : i32
    %41 = arith.cmpi ne, %40, %c0_i32_21 : i32
    scf.if %41 {
      %c0_22 = arith.constant 0 : index
      %c0_23 = arith.constant 0 : index
      %42 = vector.load %arg9[%c0_22, %c0_23] : memref<16x256xf32, #tpu.memory_space<vmem>>, vector<16x256xf32>
      %c0_24 = arith.constant 0 : index
      %c0_25 = arith.constant 0 : index
      %43 = vector.load %arg5[%c0_24, %c0_25] : memref<1x256xf32, #tpu.memory_space<vmem>>, vector<1x256xf32>
      %44 = vector.broadcast %43 : vector<1x256xf32> to vector<16x256xf32>
      %45 = arith.addf %42, %44 : vector<16x256xf32>
      %cst_26 = arith.constant dense<0.000000e+00> : vector<256xf32>
      %46 = vector.multi_reduction <add>, %45, %cst_26 [0] : vector<16x256xf32> to vector<256xf32>
      %47 = vector.shape_cast %46 : vector<256xf32> to vector<1x256xf32>
      %cst_27 = arith.constant 1.600000e+01 : f32
      %48 = vector.broadcast %cst_27 : f32 to vector<1x256xf32>
      %49 = arith.divf %47, %48 : vector<1x256xf32>
      %50 = vector.broadcast %49 : vector<1x256xf32> to vector<16x256xf32>
      %51 = arith.subf %45, %50 : vector<16x256xf32>
      %52 = arith.mulf %51, %51 : vector<16x256xf32>
      %cst_28 = arith.constant dense<0.000000e+00> : vector<256xf32>
      %53 = vector.multi_reduction <add>, %52, %cst_28 [0] : vector<16x256xf32> to vector<256xf32>
      %54 = vector.shape_cast %53 : vector<256xf32> to vector<1x256xf32>
      %cst_29 = arith.constant 1.600000e+01 : f32
      %55 = vector.broadcast %cst_29 : f32 to vector<1x256xf32>
      %56 = arith.divf %54, %55 : vector<1x256xf32>
      %cst_30 = arith.constant 9.99999974E-6 : f32
      %57 = vector.broadcast %cst_30 : f32 to vector<1x256xf32>
      %58 = arith.addf %56, %57 : vector<1x256xf32>
      %59 = math.rsqrt %58 : vector<1x256xf32>
      %60 = vector.broadcast %59 : vector<1x256xf32> to vector<16x256xf32>
      %61 = arith.mulf %51, %60 : vector<16x256xf32>
      %cst_31 = arith.constant 5.000000e-01 : f32
      %62 = vector.broadcast %cst_31 : f32 to vector<16x256xf32>
      %63 = arith.mulf %62, %61 : vector<16x256xf32>
      %cst_32 = arith.constant 0.707106769 : f32
      %64 = vector.broadcast %cst_32 : f32 to vector<16x256xf32>
      %65 = arith.mulf %61, %64 : vector<16x256xf32>
      %66 = math.erf %65 : vector<16x256xf32>
      %cst_33 = arith.constant 1.000000e+00 : f32
      %67 = vector.broadcast %cst_33 : f32 to vector<16x256xf32>
      %68 = arith.addf %67, %66 : vector<16x256xf32>
      %69 = arith.mulf %63, %68 : vector<16x256xf32>
      %70 = arith.truncf %69 : vector<16x256xf32> to vector<16x256xbf16>
      %c0_34 = arith.constant 0 : index
      %c0_35 = arith.constant 0 : index
      %71 = vector.load %arg6[%c0_34, %c0_35] : memref<256x128xbf16, #tpu.memory_space<vmem>>, vector<256x128xbf16>
      %cst_36 = arith.constant dense<0.000000e+00> : vector<16x128xf32>
      %72 = tpu.matmul %70, %71, %cst_36 {dimension_numbers = #tpu.dot_dimension_numbers<[1], [0], [0], [1], [0, 0, 1, 1], [], []>} : vector<16x256xbf16>, vector<256x128xbf16>, vector<16x128xf32> -> vector<16x128xf32>
      %c0_37 = arith.constant 0 : index
      %c0_38 = arith.constant 0 : index
      %73 = vector.load %arg7[%c0_37, %c0_38] : memref<1x128xf32, #tpu.memory_space<vmem>>, vector<1x128xf32>
      %74 = vector.broadcast %73 : vector<1x128xf32> to vector<16x128xf32>
      %75 = arith.addf %72, %74 : vector<16x128xf32>
      %76 = arith.mulf %75, %75 : vector<16x128xf32>
      %cst_39 = arith.constant dense<0.000000e+00> : vector<16xf32>
      %77 = vector.multi_reduction <add>, %76, %cst_39 [1] : vector<16x128xf32> to vector<16xf32>
      %78 = vector.shape_cast %77 : vector<16xf32> to vector<16x1xf32>
      %cst_40 = arith.constant 1.000000e-24 : f32
      %79 = vector.broadcast %cst_40 : f32 to vector<16x1xf32>
      %80 = arith.maximumf %78, %79 : vector<16x1xf32>
      %81 = math.rsqrt %80 : vector<16x1xf32>
      %82 = vector.broadcast %81 : vector<16x1xf32> to vector<16x128xf32>
      %83 = arith.mulf %75, %82 : vector<16x128xf32>
      %84 = arith.truncf %83 : vector<16x128xf32> to vector<16x128xbf16>
      %c0_41 = arith.constant 0 : index
      %c0_42 = arith.constant 0 : index
      %85 = vector.load %arg8[%c0_41, %c0_42] : memref<16x128xbf16, #tpu.memory_space<vmem>>, vector<16x128xbf16>
      tpu.vector_store %arg8[%c0_41, %c0_42], %84 {strides = array<i32>} : memref<16x128xbf16, #tpu.memory_space<vmem>>, vector<16x128xbf16>,
    } else {
    }
    return
  }
  func.func @transform_0(%arg0: i32) -> (i32, i32) {
    %c0_i32 = arith.constant 0 : i32
    %c0_i32_0 = arith.constant 0 : i32
    %c0_i32_1 = arith.constant 0 : i32
    return %c0_i32, %c0_i32_0 : i32, i32
  }
  func.func @transform_1(%arg0: i32) -> (i32, i32) {
    %c0_i32 = arith.constant 0 : i32
    %c0_i32_0 = arith.constant 0 : i32
    return %c0_i32, %arg0 : i32, i32
  }
  func.func @transform_2(%arg0: i32) -> (i32, i32) {
    %c0_i32 = arith.constant 0 : i32
    %c0_i32_0 = arith.constant 0 : i32
    return %c0_i32, %arg0 : i32, i32
  }
  func.func @transform_3(%arg0: i32) -> (i32, i32) {
    %c0_i32 = arith.constant 0 : i32
    %c0_i32_0 = arith.constant 0 : i32
    return %arg0, %c0_i32 : i32, i32
  }
  func.func @transform_4(%arg0: i32) -> (i32, i32) {
    %c0_i32 = arith.constant 0 : i32
    %c0_i32_0 = arith.constant 0 : i32
    %c0_i32_1 = arith.constant 0 : i32
    return %c0_i32, %c0_i32_0 : i32, i32
  }
  func.func @transform_5(%arg0: i32) -> (i32, i32) {
    %c0_i32 = arith.constant 0 : i32
    %c0_i32_0 = arith.constant 0 : i32
    %c0_i32_1 = arith.constant 0 : i32
    return %c0_i32, %c0_i32_0 : i32, i32
  }
  func.func @transform_6(%arg0: i32) -> (i32, i32) {
    %c0_i32 = arith.constant 0 : i32
    %c0_i32_0 = arith.constant 0 : i32
    %c0_i32_1 = arith.constant 0 : i32
    return %c0_i32, %c0_i32_0 : i32, i32
  }
  func.func @transform_7(%arg0: i32) -> (i32, i32) {
    %c0_i32 = arith.constant 0 : i32
    %c0_i32_0 = arith.constant 0 : i32
    %c0_i32_1 = arith.constant 0 : i32
    return %c0_i32, %c0_i32_0 : i32, i32
  }
}

</mosaic_0001>

<llo_original>
// kernel: dino_head_forward.3
$region0: #{dino_head_forward.3}
  #allocation0 [shape = 'u32[]', space=smem, size = 0x4, offset = 0x4, fixed_abs, tag = 'smem constant byte address 0x4 - core index']
  #allocation1 [shape = 'u32[72,128]{1,0:T(1,128)}', space=vmem, size = 0x9000, scoped, tag = 'internal scratch']
  %s0 = inlined_call_operand.vmem [shape: bf16[16,128], index: 0, kind: input, shape index: {}]
  %s1 = inlined_call_operand.hbm [shape: bf16[128,1024], index: 1, kind: input, shape index: {}]
  %s2 = inlined_call_operand.vmem [shape: f32[1,1024], index: 2, kind: input, shape index: {}]
  %s3 = inlined_call_operand.hbm [shape: bf16[16,1024], index: 3, kind: output, shape index: {}]
  %s4 = sld [smem:[#allocation0]]
  $region49: #{dino_head_forward.3} parent=0
    _
  %s6 = ssub.s32 1, %s4
  %s7 = scalar_select 0, %s6, %s4
  $region1: #{dino_head_forward.3} parent=0
    #allocation2 [shape = 'u8[131072]{0}', space=vmem, size = 0x20000, scoped, tag = 'input window, operand 1']
    #allocation3 [shape = 's32[2]{0}', space=sflag, size = 0x8, scoped, tag = 'scoped memory for dino_head_forward.3']
    #allocation4 [shape = 's32[2]{0}', space=sflag, size = 0x8, scoped, tag = 'scoped memory for dino_head_forward.3']
    #allocation5 [shape = 'u8[16384]{0}', space=vmem, size = 0x4000, scoped, tag = 'output window, operand 0']
    %8 = vsyncpa [#allocation3], 0
    %s9 = scalar_lea.sflag [#allocation3], 1
    %10 = vsyncpa %s9, 0
    %11 = vsyncpa [#allocation4], 0
    %s12 = scalar_lea.sflag [#allocation4], 1
    %13 = vsyncpa %s12, 0
    loop: start=0, step=1, limit=6
    $region2: #{dino_head_forward.3} parent=1 // loop_pre_header
      _
    $region3: #{dino_head_forward.3} parent=1 // loop_header
      %s15 = sphi 0, %s19
      %p16 = scmp.ge.s32.totalorder %s15, 6
      %s23 = sphi 0, %s23
      %s25 = sphi 0, %s23
      %s26 = sphi 0, %s25
      %s40 = sphi 0, %s26
      %s46 = sphi 0, %s48
      %s49 = sphi 0, %s46
      %s50 = sphi 0, %s49
      %s66 = sphi 0, %s50
      %s72 = sphi 0, %s74
      %s75 = sphi 0, %s72
      %s76 = sphi 0, %s75
      %s92 = sphi 0, %s76
      %s98 = sphi 0, %s100
      %s101 = sphi 0, %s98
      %s102 = sphi 0, %s101
      %s118 = sphi 0, %s102
    $region4: #{dino_head_forward.3} parent=1 // loop_header_branch
      %18 = sbr.rel (%p16) target = $region8
    $region5: #{dino_head_forward.3} parent=1 // loop_body
      %s20 = ssub.s32 %s15, 1
      %s21 = ssub.s32 %s15, 2
      %s22 = sadd.s32 %s15, 1
      %s24 = sadd.s32 %s23, 1
      %p27 = scmp.eq.s32.totalorder %s15, 3
      %p28 = scmp.ne.s32.totalorder %s23, %s25
      %p29 = scmp.eq.s32.totalorder %s15, 0
      %p30 = por %p28, %p29
      %p31 = scmp.ne.s32.totalorder %s23, %s25
      %p32 = scmp.eq.s32.totalorder %s20, 3
      %p33 = por %p31, %p32
      %p34 = scmp.ne.s32.totalorder %s25, %s26
      %p35 = scmp.eq.s32.totalorder %s20, 0
      %p36 = por %p34, %p35
      %p37 = scmp.ne.s32.totalorder %s25, %s26
      %p38 = scmp.eq.s32.totalorder %s21, 3
      %p39 = por %p37, %p38
      %p41 = scmp.ne.s32.totalorder %s26, %s40
      %p42 = scmp.eq.s32.totalorder %s21, 0
      %p43 = por %p41, %p42
      %s44 = ssub.s32 %s15, %s22
      %p45 = scmp.eq.s32.totalorder %s44, 0
      %s47 = sadd.s32 %s46, 1
      %s48 = scalar_select %p45, %s46, %s47
      %p51 = pneg %p45
      %p52 = scmp.eq.s32.totalorder %s15, 3
      %p53 = por %p51, %p52
      %p54 = scmp.ne.s32.totalorder %s46, %s49
      %p55 = scmp.eq.s32.totalorder %s15, 0
      %p56 = por %p54, %p55
      %p57 = scmp.ne.s32.totalorder %s46, %s49
      %p58 = scmp.eq.s32.totalorder %s20, 3
      %p59 = por %p57, %p58
      %p60 = scmp.ne.s32.totalorder %s49, %s50
      %p61 = scmp.eq.s32.totalorder %s20, 0
      %p62 = por %p60, %p61
      %p63 = scmp.ne.s32.totalorder %s49, %s50
      %p64 = scmp.eq.s32.totalorder %s21, 3
      %p65 = por %p63, %p64
      %p67 = scmp.ne.s32.totalorder %s50, %s66
      %p68 = scmp.eq.s32.totalorder %s21, 0
      %p69 = por %p67, %p68
      %s70 = ssub.s32 %s15, %s22
      %p71 = scmp.eq.s32.totalorder %s70, 0
      %s73 = sadd.s32 %s72, 1
      %s74 = scalar_select %p71, %s72, %s73
      %p77 = pneg %p71
      %p78 = scmp.eq.s32.totalorder %s15, 3
      %p79 = por %p77, %p78
      %p80 = scmp.ne.s32.totalorder %s72, %s75
      %p81 = scmp.eq.s32.totalorder %s15, 0
      %p82 = por %p80, %p81
      %p83 = scmp.ne.s32.totalorder %s72, %s75
      %p84 = scmp.eq.s32.totalorder %s20, 3
      %p85 = por %p83, %p84
      %p86 = scmp.ne.s32.totalorder %s75, %s76
      %p87 = scmp.eq.s32.totalorder %s20, 0
      %p88 = por %p86, %p87
      %p89 = scmp.ne.s32.totalorder %s75, %s76
      %p90 = scmp.eq.s32.totalorder %s21, 3
      %p91 = por %p89, %p90
      %p93 = scmp.ne.s32.totalorder %s76, %s92
      %p94 = scmp.eq.s32.totalorder %s21, 0
      %p95 = por %p93, %p94
      %s96 = ssub.s32 %s15, %s22
      %p97 = scmp.eq.s32.totalorder %s96, 0
      %s99 = sadd.s32 %s98, 1
      %s100 = scalar_select %p97, %s98, %s99
      %p103 = pneg %p97
      %p104 = scmp.eq.s32.totalorder %s15, 3
      %p105 = por %p103, %p104
      %p106 = scmp.ne.s32.totalorder %s98, %s101
      %p107 = scmp.eq.s32.totalorder %s15, 0
      %p108 = por %p106, %p107
      %p109 = scmp.ne.s32.totalorder %s98, %s101
      %p110 = scmp.eq.s32.totalorder %s20, 3
      %p111 = por %p109, %p110
      %p112 = scmp.ne.s32.totalorder %s101, %s102
      %p113 = scmp.eq.s32.totalorder %s20, 0
      %p114 = por %p112, %p113
      %p115 = scmp.ne.s32.totalorder %s101, %s102
      %p116 = scmp.eq.s32.totalorder %s21, 3
      %p117 = por %p115, %p116
      %p119 = scmp.ne.s32.totalorder %s102, %s118
      %p120 = scmp.eq.s32.totalorder %s21, 0
      %p121 = por %p119, %p120
      %p122 = scmp.le.s32.totalorder 1, %s15
      %p123 = scmp.lt.s32.totalorder %s15, 5
      %p124 = pnand %p122, %p123
      %p125 = pneg %p124
      // Predicated region
      $region9: #{dino_head_forward.3} parent=5 // pred_check
        _
      $region10: #{dino_head_forward.3} parent=5 // pred_check_branch
        %127 = sbr.rel (%p124) target = $region12
      $region11: #{dino_head_forward.3} parent=5 // pred_region
        %s128 = ssub.s32 %s15, 1
        // Predicated region
        $region13: #{dino_head_forward.3} parent=11 // pred_check
          %p129 = pneg %p36
        $region14: #{dino_head_forward.3} parent=11 // pred_check_branch
          %131 = sbr.rel (%p129) target = $region16
        $region15: #{dino_head_forward.3} parent=11 // pred_region
          _
        $region16: #{dino_head_forward.3} parent=11 // pred_fallthru
          _
      $region12: #{dino_head_forward.3} parent=5 // pred_fallthru
        _
      %p132 = scmp.lt.s32.totalorder %s15, 4
      // Predicated region
      $region17: #{dino_head_forward.3} parent=5 // pred_check
        %p133 = pneg %p132
      $region18: #{dino_head_forward.3} parent=5 // pred_check_branch
        %135 = sbr.rel (%p133) target = $region20
      $region19: #{dino_head_forward.3} parent=5 // pred_region
        // Predicated region
        $region21: #{dino_head_forward.3} parent=19 // pred_check
          %p136 = pneg %p56
        $region22: #{dino_head_forward.3} parent=19 // pred_check_branch
          %138 = sbr.rel (%p136) target = $region24
        $region23: #{dino_head_forward.3} parent=19 // pred_region
          %s139 = sand.u32 %s46, 1
          %s140 = scalar_lea.sflag [#allocation3], %s139
          %s141 = sand.u32 %s46, 1
          %s142 = smul.addr %s141, 128
          %s143 = scalar_lea.vmem [#allocation2], %s142
          %s144 = smul.u32 2, %s15
          %146 = vsyncadd %s140, 0
          %s147 = smul.addr %s144, 4
          %s148 = scalar_lea.hbm %s1, %s147
          %s149 = sshll.u32 %s148, 4
          %s150 = int_to_ptr.hbm [resolvable:$true] %s149
          %s151 = sshll.u32 %s143, 4
          %s152 = int_to_ptr.vmem [resolvable:$true] %s151
          %157 = dma.hbm_to_vmem [thread:$0]  %s150, 2048, %s152, %s140, 512, 128, 8
        $region24: #{dino_head_forward.3} parent=19 // pred_fallthru
          _
        // Predicated region
        $region25: #{dino_head_forward.3} parent=19 // pred_check
          %p158 = pneg %p82
        $region26: #{dino_head_forward.3} parent=19 // pred_check_branch
          %160 = sbr.rel (%p158) target = $region28
        $region27: #{dino_head_forward.3} parent=19 // pred_region
          %s161 = smul.u32 2, %s15
          %p162 = scmp.lt.s32.totalorder %s161, 7
          %s163 = scalar_select %p162, %s161, 7
          %s164 = scalar_lea.vmem %s2, %s163
          %s165 = smul.u32 2, %s15
        $region28: #{dino_head_forward.3} parent=19 // pred_fallthru
          _
      $region20: #{dino_head_forward.3} parent=5 // pred_fallthru
        _
      %p166 = scmp.le.s32.totalorder 1, %s15
      %p167 = scmp.lt.s32.totalorder %s15, 5
      %p168 = pnand %p166, %p167
      %p169 = pneg %p168
      // Predicated region
      $region29: #{dino_head_forward.3} parent=5 // pred_check
        _
      $region30: #{dino_head_forward.3} parent=5 // pred_check_branch
        %171 = sbr.rel (%p168) target = $region32
      $region31: #{dino_head_forward.3} parent=5 // pred_region
        %s172 = ssub.s32 %s15, 1
        %s173 = sand.u32 %s49, 1
        %s174 = scalar_lea.sflag [#allocation3], %s173
        %s175 = sand.u32 %s49, 1
        %s176 = smul.addr %s175, 128
        %s177 = scalar_lea.vmem [#allocation2], %s176
        // Predicated region
        $region33: #{dino_head_forward.3} parent=31 // pred_check
          %p178 = pneg %p62
        $region34: #{dino_head_forward.3} parent=31 // pred_check_branch
          %180 = sbr.rel (%p178) target = $region36
        $region35: #{dino_head_forward.3} parent=31 // pred_region
          %182 = dma.done %s174, 2048
        $region36: #{dino_head_forward.3} parent=31 // pred_fallthru
          _
        %p183 = pneg %p36
        %p184 = pneg %p33
        %s185 = sand.u32 %s49, 1
        %s186 = scalar_lea.sflag [#allocation3], %s185
        %s187 = sand.u32 %s49, 1
        %s188 = smul.addr %s187, 128
        %s189 = scalar_lea.vmem [#allocation2], %s188
        %p190 = pneg %p62
        %p191 = pneg %p59
        %s192 = smul.u32 2, %s20
        %p193 = scmp.lt.s32.totalorder %s192, 7
        %s194 = scalar_select %p193, %s192, 7
        %s195 = scalar_lea.vmem %s2, %s194
        %p196 = pneg %p88
        %p197 = pneg %p85
        %p198 = pneg %p114
        %p199 = pneg %p111
        %s200 = sand.u32 %s101, 1
        %s201 = scalar_lea.sflag [#allocation4], %s200
        %s202 = sand.u32 %s101, 1
        %s203 = smul.addr %s202, 16
        %s204 = scalar_lea.vmem [#allocation5], %s203
        %s205 = smul.u32 2, %s20
        %s206 = smul.u32 2, %s20
        %p207 = scmp.lt.s32.totalorder %s206, 7
        %s208 = scalar_select %p207, %s206, 7
        %s209 = scalar_lea.vmem %s2, %s208
        %s210 = smul.u32 2, %s20
        %s211 = smul.u32 2, %s20
        %v212 = vld [vmem:[%s0] sm:$0xf]
        %v213 = vld [vmem:[%s0 + $0x4] sm:$0xf]
        %v214 = vld [vmem:[%s177] sm:$0xff]
        %v215 = vld [vmem:[%s177 + $0x8] sm:$0xff]
        %v216 = vld [vmem:[%s177 + $0x10] sm:$0xff]
        %v217 = vld [vmem:[%s177 + $0x18] sm:$0xff]
        %v218 = vld [vmem:[%s177 + $0x20] sm:$0xff]
        %v219 = vld [vmem:[%s177 + $0x28] sm:$0xff]
        %v220 = vld [vmem:[%s177 + $0x30] sm:$0xff]
        %v221 = vld [vmem:[%s177 + $0x38] sm:$0xff]
        %v222 = vld [vmem:[%s177 + $0x40] sm:$0xff]
        %v223 = vld [vmem:[%s177 + $0x48] sm:$0xff]
        %v224 = vld [vmem:[%s177 + $0x50] sm:$0xff]
        %v225 = vld [vmem:[%s177 + $0x58] sm:$0xff]
        %v226 = vld [vmem:[%s177 + $0x60] sm:$0xff]
        %v227 = vld [vmem:[%s177 + $0x68] sm:$0xff]
        %v228 = vld [vmem:[%s177 + $0x70] sm:$0xff]
        %v229 = vld [vmem:[%s177 + $0x78] sm:$0xff]
        %v232 = vunpack.c.l.b16 %v212
        %v233 = vunpack.c.l.b16 %v213
        %v234 = vpack.c.b16 %v233, %v232
        %v252 = vunpack.c.l.b16 %v214
        %v253 = vunpack.c.h.b16 %v214
        %v254 = vunpack.c.l.b16 %v215
        %v255 = vunpack.c.h.b16 %v215
        %v256 = vunpack.c.l.b16 %v216
        %v257 = vunpack.c.h.b16 %v216
        %v258 = vunpack.c.l.b16 %v217
        %v259 = vunpack.c.h.b16 %v217
        %v260 = vunpack.c.l.b16 %v218
        %v261 = vunpack.c.h.b16 %v218
        %v262 = vunpack.c.l.b16 %v219
        %v263 = vunpack.c.h.b16 %v219
        %v264 = vunpack.c.l.b16 %v220
        %v265 = vunpack.c.h.b16 %v220
        %v266 = vunpack.c.l.b16 %v221
        %v267 = vunpack.c.h.b16 %v221
        %v268 = vunpack.c.l.b16 %v222
        %v269 = vunpack.c.h.b16 %v222
        %v270 = vunpack.c.l.b16 %v223
        %v271 = vunpack.c.h.b16 %v223
        %v272 = vunpack.c.l.b16 %v224
        %v273 = vunpack.c.h.b16 %v224
        %v274 = vunpack.c.l.b16 %v225
        %v275 = vunpack.c.h.b16 %v225
        %v276 = vunpack.c.l.b16 %v226
        %v277 = vunpack.c.h.b16 %v226
        %v278 = vunpack.c.l.b16 %v227
        %v279 = vunpack.c.h.b16 %v227
        %v280 = vunpack.c.l.b16 %v228
        %v281 = vunpack.c.h.b16 %v228
        %v282 = vunpack.c.l.b16 %v229
        %v283 = vunpack.c.h.b16 %v229
        %v284 = vpack.c.b16 %v254, %v252
        %v285 = vpack.c.b16 %v255, %v253
        %v286 = vpack.c.b16 %v258, %v256
        %v287 = vpack.c.b16 %v259, %v257
        %v288 = vpack.c.b16 %v262, %v260
        %v289 = vpack.c.b16 %v263, %v261
        %v290 = vpack.c.b16 %v266, %v264
        %v291 = vpack.c.b16 %v267, %v265
        %v292 = vpack.c.b16 %v270, %v268
        %v293 = vpack.c.b16 %v271, %v269
        %v294 = vpack.c.b16 %v274, %v272
        %v295 = vpack.c.b16 %v275, %v273
        %v296 = vpack.c.b16 %v278, %v276
        %v297 = vpack.c.b16 %v279, %v277
        %v298 = vpack.c.b16 %v282, %v280
        %v299 = vpack.c.b16 %v283, %v281
        %316 = vmatpush.bf16.msra.mxu0 %v298
        %317 = vmatpush.bf16.msra.mxu0 %v296
        %318 = vmatpush.bf16.msra.mxu0 %v294
        %319 = vmatpush.bf16.msra.mxu0 %v292
        %320 = vmatpush.bf16.msra.mxu0 %v290
        %321 = vmatpush.bf16.msra.mxu0 %v288
        %322 = vmatpush.bf16.msra.mxu0 %v286
        %323 = vmatpush.bf16.msra.mxu0 %v284
        %324 = vmatmul.bf16.gmra.mxu0 %v234
        %v325 = vpop.f32.mrf.mxu0
        %v326 = vadd.f32 0.0, %v325
        %v327 = vpop.f32.mrf.mxu0
        %v328 = vadd.f32 0.0, %v327
        %329 = vdwg.mxu0
        %330 = vmatpush.bf16.msra.mxu0 %v299
        %331 = vmatpush.bf16.msra.mxu0 %v297
        %332 = vmatpush.bf16.msra.mxu0 %v295
        %333 = vmatpush.bf16.msra.mxu0 %v293
        %334 = vmatpush.bf16.msra.mxu0 %v291
        %335 = vmatpush.bf16.msra.mxu0 %v289
        %336 = vmatpush.bf16.msra.mxu0 %v287
        %337 = vmatpush.bf16.msra.mxu0 %v285
        %338 = vmatmul.bf16.gmra.mxu0 %v234
        %v339 = vpop.f32.mrf.mxu0
        %v340 = vadd.f32 0.0, %v339
        %v341 = vpop.f32.mrf.mxu0
        %v342 = vadd.f32 0.0, %v341
        %343 = vdwg.mxu0
        %v344 = vld [vmem:[%s209] sm:$0x3]
        %v346 = vperm.slane %v344, 0
        %v347 = vperm.slane %v344, 1
        %v350 = vmul.f32 %v326, %v346
        %v351 = vmul.f32 %v340, %v347
        %v352 = vmul.f32 %v328, %v346
        %v353 = vmul.f32 %v342, %v347
        %v354 = vpack.c.bf16 %v351, %v350
        %v355 = vpack.c.bf16 %v353, %v352
        %356 = vst [vmem:[%s204] sm:$0xff] %v354
        %357 = vst [vmem:[%s204 + $0x8] sm:$0xff] %v355
        %s358 = sand.u32 %s101, 1
        %s359 = scalar_lea.sflag [#allocation4], %s358
        %s360 = sand.u32 %s101, 1
        %s361 = smul.addr %s360, 16
        %s362 = scalar_lea.vmem [#allocation5], %s361
        // Predicated region
        $region37: #{dino_head_forward.3} parent=31 // pred_check
          %p363 = pneg %p111
        $region38: #{dino_head_forward.3} parent=31 // pred_check_branch
          %365 = sbr.rel (%p363) target = $region40
        $region39: #{dino_head_forward.3} parent=31 // pred_region
          %s366 = smul.u32 2, %s20
          %368 = vsyncadd %s359, 0
          %s369 = smul.addr %s366, 4
          %s370 = scalar_lea.hbm %s3, %s369
          %s371 = sshll.u32 %s362, 4
          %s372 = int_to_ptr.vmem [resolvable:$true] %s371
          %s373 = sshll.u32 %s370, 4
          %s374 = int_to_ptr.hbm [resolvable:$true] %s373
          %379 = dma.vmem_to_hbm [thread:$0]  %s372, 256, %s374, %s359, 128, 512, 8
        $region40: #{dino_head_forward.3} parent=31 // pred_fallthru
          _
      $region32: #{dino_head_forward.3} parent=5 // pred_fallthru
        _
      %p380 = scmp.le.s32.totalorder 2, %s15
      // Predicated region
      $region41: #{dino_head_forward.3} parent=5 // pred_check
        %p381 = pneg %p380
      $region42: #{dino_head_forward.3} parent=5 // pred_check_branch
        %383 = sbr.rel (%p381) target = $region44
      $region43: #{dino_head_forward.3} parent=5 // pred_region
        %s384 = ssub.s32 %s15, 2
        // Predicated region
        $region45: #{dino_head_forward.3} parent=43 // pred_check
          %p385 = pneg %p117
        $region46: #{dino_head_forward.3} parent=43 // pred_check_branch
          %387 = sbr.rel (%p385) target = $region48
        $region47: #{dino_head_forward.3} parent=43 // pred_region
          %s388 = sand.u32 %s102, 1
          %s389 = scalar_lea.sflag [#allocation4], %s388
          %s390 = sand.u32 %s102, 1
          %s391 = smul.addr %s390, 16
          %s392 = scalar_lea.vmem [#allocation5], %s391
          %394 = dma.done %s389, 256
        $region48: #{dino_head_forward.3} parent=43 // pred_fallthru
          _
      $region44: #{dino_head_forward.3} parent=5 // pred_fallthru
        _
    $region6: #{dino_head_forward.3} parent=1 // loop_footer
      %s19 = sadd.s32 1, %s15
    $region7: #{dino_head_forward.3} parent=1 // loop_footer_branch
      %14 = sbr.rel target = $region3
    $region8: #{dino_head_forward.3} parent=1 // loop_exit
      _
    %395 = vsyncpa [#allocation3], 1
    %s396 = scalar_lea.sflag [#allocation3], 1
    %397 = vsyncpa %s396, 1
    %398 = vsyncpa [#allocation4], 1
    %s399 = scalar_lea.sflag [#allocation4], 1
    %400 = vsyncpa %s399, 1

// kernel: dino_head_forward.2
$region0: #{dino_head_forward.2}
  #allocation0 [shape = 'u32[]', space=smem, size = 0x4, offset = 0x4, fixed_abs, tag = 'smem constant byte address 0x4 - core index']
  #allocation1 [shape = 'u32[72,128]{1,0:T(1,128)}', space=vmem, size = 0x9000, scoped, tag = 'internal scratch']
  #allocation2 [shape = 'f32[16,256]{1,0:T(8,128)}', space=vmem, size = 0x4000, scoped, tag = 'scratch operand']
  %s0 = inlined_call_operand.vmem [shape: bf16[16,128], index: 0, kind: input, shape index: {}]
  %s1 = inlined_call_operand.hbm [shape: bf16[128,256], index: 1, kind: input, shape index: {}]
  %s2 = inlined_call_operand.vmem [shape: f32[1,256], index: 2, kind: input, shape index: {}]
  %s3 = inlined_call_operand.hbm [shape: bf16[256,256], index: 3, kind: input, shape index: {}]
  %s4 = inlined_call_operand.vmem [shape: f32[1,256], index: 4, kind: input, shape index: {}]
  %s5 = inlined_call_operand.hbm [shape: bf16[256,128], index: 5, kind: input, shape index: {}]
  %s6 = inlined_call_operand.vmem [shape: f32[1,128], index: 6, kind: input, shape index: {}]
  %s7 = inlined_call_operand.vmem [shape: bf16[16,128], index: 7, kind: output, shape index: {}]
  %s8 = sld [smem:[#allocation0]]
  $region81: #{dino_head_forward.2} parent=0
    _
  %s10 = ssub.s32 1, %s8
  %s11 = scalar_select 0, %s10, %s8
  $region1: #{dino_head_forward.2} parent=0
    #allocation3 [shape = 'u8[65536]{0}', space=vmem, size = 0x10000, scoped, tag = 'input window, operand 1']
    #allocation4 [shape = 's32[2]{0}', space=sflag, size = 0x8, scoped, tag = 'scoped memory for dino_head_forward.2']
    #allocation5 [shape = 'u8[131072]{0}', space=vmem, size = 0x20000, scoped, tag = 'input window, operand 3']
    #allocation6 [shape = 's32[2]{0}', space=sflag, size = 0x8, scoped, tag = 'scoped memory for dino_head_forward.2']
    #allocation7 [shape = 'u8[65536]{0}', space=vmem, size = 0x10000, scoped, tag = 'input window, operand 5, single buffered']
    %12 = vsyncpa [#allocation4], 0
    %s13 = scalar_lea.sflag [#allocation4], 1
    %14 = vsyncpa %s13, 0
    %15 = vsyncpa [#allocation6], 0
    %s16 = scalar_lea.sflag [#allocation6], 1
    %17 = vsyncpa %s16, 0
    loop: start=0, step=1, limit=4
    $region2: #{dino_head_forward.2} parent=1 // loop_pre_header
      _
    $region3: #{dino_head_forward.2} parent=1 // loop_header
      %s19 = sphi 0, %s23
      %p20 = scmp.ge.s32.totalorder %s19, 4
      %s27 = sphi 0, %s27
      %s29 = sphi 0, %s27
      %s30 = sphi 0, %s29
      %s44 = sphi 0, %s30
      %s50 = sphi 0, %s52
      %s53 = sphi 0, %s50
      %s54 = sphi 0, %s53
      %s70 = sphi 0, %s54
      %s76 = sphi 0, %s78
      %s79 = sphi 0, %s76
      %s80 = sphi 0, %s79
      %s96 = sphi 0, %s80
      %s102 = sphi 0, %s104
      %s105 = sphi 0, %s102
      %s106 = sphi 0, %s105
      %s122 = sphi 0, %s106
      %s126 = sphi 0, %s126
      %s128 = sphi 0, %s126
      %s129 = sphi 0, %s128
      %s143 = sphi 0, %s129
      %s147 = sphi 0, %s147
      %s149 = sphi 0, %s147
      %s150 = sphi 0, %s149
      %s164 = sphi 0, %s150
      %s168 = sphi 0, %s168
      %s170 = sphi 0, %s168
      %s171 = sphi 0, %s170
      %s185 = sphi 0, %s171
      %s189 = sphi 0, %s189
      %s191 = sphi 0, %s189
      %s192 = sphi 0, %s191
      %s206 = sphi 0, %s192
    $region4: #{dino_head_forward.2} parent=1 // loop_header_branch
      %22 = sbr.rel (%p20) target = $region8
    $region5: #{dino_head_forward.2} parent=1 // loop_body
      %s24 = ssub.s32 %s19, 1
      %s25 = ssub.s32 %s19, 2
      %s26 = sadd.s32 %s19, 1
      %s28 = sadd.s32 %s27, 1
      %p31 = scmp.eq.s32.totalorder %s19, 1
      %p32 = scmp.ne.s32.totalorder %s27, %s29
      %p33 = scmp.eq.s32.totalorder %s19, 0
      %p34 = por %p32, %p33
      %p35 = scmp.ne.s32.totalorder %s27, %s29
      %p36 = scmp.eq.s32.totalorder %s24, 1
      %p37 = por %p35, %p36
      %p38 = scmp.ne.s32.totalorder %s29, %s30
      %p39 = scmp.eq.s32.totalorder %s24, 0
      %p40 = por %p38, %p39
      %p41 = scmp.ne.s32.totalorder %s29, %s30
      %p42 = scmp.eq.s32.totalorder %s25, 1
      %p43 = por %p41, %p42
      %p45 = scmp.ne.s32.totalorder %s30, %s44
      %p46 = scmp.eq.s32.totalorder %s25, 0
      %p47 = por %p45, %p46
      %s48 = ssub.s32 %s19, %s26
      %p49 = scmp.eq.s32.totalorder %s48, 0
      %s51 = sadd.s32 %s50, 1
      %s52 = scalar_select %p49, %s50, %s51
      %p55 = pneg %p49
      %p56 = scmp.eq.s32.totalorder %s19, 1
      %p57 = por %p55, %p56
      %p58 = scmp.ne.s32.totalorder %s50, %s53
      %p59 = scmp.eq.s32.totalorder %s19, 0
      %p60 = por %p58, %p59
      %p61 = scmp.ne.s32.totalorder %s50, %s53
      %p62 = scmp.eq.s32.totalorder %s24, 1
      %p63 = por %p61, %p62
      %p64 = scmp.ne.s32.totalorder %s53, %s54
      %p65 = scmp.eq.s32.totalorder %s24, 0
      %p66 = por %p64, %p65
      %p67 = scmp.ne.s32.totalorder %s53, %s54
      %p68 = scmp.eq.s32.totalorder %s25, 1
      %p69 = por %p67, %p68
      %p71 = scmp.ne.s32.totalorder %s54, %s70
      %p72 = scmp.eq.s32.totalorder %s25, 0
      %p73 = por %p71, %p72
      %s74 = ssub.s32 %s19, %s26
      %p75 = scmp.eq.s32.totalorder %s74, 0
      %s77 = sadd.s32 %s76, 1
      %s78 = scalar_select %p75, %s76, %s77
      %p81 = pneg %p75
      %p82 = scmp.eq.s32.totalorder %s19, 1
      %p83 = por %p81, %p82
      %p84 = scmp.ne.s32.totalorder %s76, %s79
      %p85 = scmp.eq.s32.totalorder %s19, 0
      %p86 = por %p84, %p85
      %p87 = scmp.ne.s32.totalorder %s76, %s79
      %p88 = scmp.eq.s32.totalorder %s24, 1
      %p89 = por %p87, %p88
      %p90 = scmp.ne.s32.totalorder %s79, %s80
      %p91 = scmp.eq.s32.totalorder %s24, 0
      %p92 = por %p90, %p91
      %p93 = scmp.ne.s32.totalorder %s79, %s80
      %p94 = scmp.eq.s32.totalorder %s25, 1
      %p95 = por %p93, %p94
      %p97 = scmp.ne.s32.totalorder %s80, %s96
      %p98 = scmp.eq.s32.totalorder %s25, 0
      %p99 = por %p97, %p98
      %s100 = ssub.s32 %s19, %s26
      %p101 = scmp.eq.s32.totalorder %s100, 0
      %s103 = sadd.s32 %s102, 1
      %s104 = scalar_select %p101, %s102, %s103
      %p107 = pneg %p101
      %p108 = scmp.eq.s32.totalorder %s19, 1
      %p109 = por %p107, %p108
      %p110 = scmp.ne.s32.totalorder %s102, %s105
      %p111 = scmp.eq.s32.totalorder %s19, 0
      %p112 = por %p110, %p111
      %p113 = scmp.ne.s32.totalorder %s102, %s105
      %p114 = scmp.eq.s32.totalorder %s24, 1
      %p115 = por %p113, %p114
      %p116 = scmp.ne.s32.totalorder %s105, %s106
      %p117 = scmp.eq.s32.totalorder %s24, 0
      %p118 = por %p116, %p117
      %p119 = scmp.ne.s32.totalorder %s105, %s106
      %p120 = scmp.eq.s32.totalorder %s25, 1
      %p121 = por %p119, %p120
      %p123 = scmp.ne.s32.totalorder %s106, %s122
      %p124 = scmp.eq.s32.totalorder %s25, 0
      %p125 = por %p123, %p124
      %s127 = sadd.s32 %s126, 1
      %p130 = scmp.eq.s32.totalorder %s19, 1
      %p131 = scmp.ne.s32.totalorder %s126, %s128
      %p132 = scmp.eq.s32.totalorder %s19, 0
      %p133 = por %p131, %p132
      %p134 = scmp.ne.s32.totalorder %s126, %s128
      %p135 = scmp.eq.s32.totalorder %s24, 1
      %p136 = por %p134, %p135
      %p137 = scmp.ne.s32.totalorder %s128, %s129
      %p138 = scmp.eq.s32.totalorder %s24, 0
      %p139 = por %p137, %p138
      %p140 = scmp.ne.s32.totalorder %s128, %s129
      %p141 = scmp.eq.s32.totalorder %s25, 1
      %p142 = por %p140, %p141
      %p144 = scmp.ne.s32.totalorder %s129, %s143
      %p145 = scmp.eq.s32.totalorder %s25, 0
      %p146 = por %p144, %p145
      %s148 = sadd.s32 %s147, 1
      %p151 = scmp.eq.s32.totalorder %s19, 1
      %p152 = scmp.ne.s32.totalorder %s147, %s149
      %p153 = scmp.eq.s32.totalorder %s19, 0
      %p154 = por %p152, %p153
      %p155 = scmp.ne.s32.totalorder %s147, %s149
      %p156 = scmp.eq.s32.totalorder %s24, 1
      %p157 = por %p155, %p156
      %p158 = scmp.ne.s32.totalorder %s149, %s150
      %p159 = scmp.eq.s32.totalorder %s24, 0
      %p160 = por %p158, %p159
      %p161 = scmp.ne.s32.totalorder %s149, %s150
      %p162 = scmp.eq.s32.totalorder %s25, 1
      %p163 = por %p161, %p162
      %p165 = scmp.ne.s32.totalorder %s150, %s164
      %p166 = scmp.eq.s32.totalorder %s25, 0
      %p167 = por %p165, %p166
      %s169 = sadd.s32 %s168, 1
      %p172 = scmp.eq.s32.totalorder %s19, 1
      %p173 = scmp.ne.s32.totalorder %s168, %s170
      %p174 = scmp.eq.s32.totalorder %s19, 0
      %p175 = por %p173, %p174
      %p176 = scmp.ne.s32.totalorder %s168, %s170
      %p177 = scmp.eq.s32.totalorder %s24, 1
      %p178 = por %p176, %p177
      %p179 = scmp.ne.s32.totalorder %s170, %s171
      %p180 = scmp.eq.s32.totalorder %s24, 0
      %p181 = por %p179, %p180
      %p182 = scmp.ne.s32.totalorder %s170, %s171
      %p183 = scmp.eq.s32.totalorder %s25, 1
      %p184 = por %p182, %p183
      %p186 = scmp.ne.s32.totalorder %s171, %s185
      %p187 = scmp.eq.s32.totalorder %s25, 0
      %p188 = por %p186, %p187
      %s190 = sadd.s32 %s189, 1
      %p193 = scmp.eq.s32.totalorder %s19, 1
      %p194 = scmp.ne.s32.totalorder %s189, %s191
      %p195 = scmp.eq.s32.totalorder %s19, 0
      %p196 = por %p194, %p195
      %p197 = scmp.ne.s32.totalorder %s189, %s191
      %p198 = scmp.eq.s32.totalorder %s24, 1
      %p199 = por %p197, %p198
      %p200 = scmp.ne.s32.totalorder %s191, %s192
      %p201 = scmp.eq.s32.totalorder %s24, 0
      %p202 = por %p200, %p201
      %p203 = scmp.ne.s32.totalorder %s191, %s192
      %p204 = scmp.eq.s32.totalorder %s25, 1
      %p205 = por %p203, %p204
      %p207 = scmp.ne.s32.totalorder %s192, %s206
      %p208 = scmp.eq.s32.totalorder %s25, 0
      %p209 = por %p207, %p208
      %p210 = scmp.le.s32.totalorder 1, %s19
      %p211 = scmp.lt.s32.totalorder %s19, 3
      %p212 = pnand %p210, %p211
      %p213 = pneg %p212
      // Predicated region
      $region9: #{dino_head_forward.2} parent=5 // pred_check
        _
      $region10: #{dino_head_forward.2} parent=5 // pred_check_branch
        %215 = sbr.rel (%p212) target = $region12
      $region11: #{dino_head_forward.2} parent=5 // pred_region
        %s216 = ssub.s32 %s19, 1
        // Predicated region
        $region13: #{dino_head_forward.2} parent=11 // pred_check
          %p217 = pneg %p40
        $region14: #{dino_head_forward.2} parent=11 // pred_check_branch
          %219 = sbr.rel (%p217) target = $region16
        $region15: #{dino_head_forward.2} parent=11 // pred_region
          _
        $region16: #{dino_head_forward.2} parent=11 // pred_fallthru
          _
        // Predicated region
        $region17: #{dino_head_forward.2} parent=11 // pred_check
          %p220 = pneg %p139
        $region18: #{dino_head_forward.2} parent=11 // pred_check_branch
          %222 = sbr.rel (%p220) target = $region20
        $region19: #{dino_head_forward.2} parent=11 // pred_region
          _
        $region20: #{dino_head_forward.2} parent=11 // pred_fallthru
          _
        // Predicated region
        $region21: #{dino_head_forward.2} parent=11 // pred_check
          %p223 = pneg %p160
        $region22: #{dino_head_forward.2} parent=11 // pred_check_branch
          %225 = sbr.rel (%p223) target = $region24
        $region23: #{dino_head_forward.2} parent=11 // pred_region
          %227 = vsyncadd [#allocation6], 0
          %s228 = sshll.u32 %s5, 4
          %s229 = int_to_ptr.hbm [resolvable:$true] %s228
          %s230 = sshll.u32 [#allocation7], 4
          %s231 = int_to_ptr.vmem [resolvable:$true] %s230
          %236 = dma.hbm_to_vmem [thread:$0]  %s229, 2048, %s231, [#allocation6], 64, 64, 4
        $region24: #{dino_head_forward.2} parent=11 // pred_fallthru
          _
        // Predicated region
        $region25: #{dino_head_forward.2} parent=11 // pred_check
          %p237 = pneg %p181
        $region26: #{dino_head_forward.2} parent=11 // pred_check_branch
          %239 = sbr.rel (%p237) target = $region28
        $region27: #{dino_head_forward.2} parent=11 // pred_region
          _
        $region28: #{dino_head_forward.2} parent=11 // pred_fallthru
          _
      $region12: #{dino_head_forward.2} parent=5 // pred_fallthru
        _
      %p240 = scmp.lt.s32.totalorder %s19, 2
      // Predicated region
      $region29: #{dino_head_forward.2} parent=5 // pred_check
        %p241 = pneg %p240
      $region30: #{dino_head_forward.2} parent=5 // pred_check_branch
        %243 = sbr.rel (%p241) target = $region32
      $region31: #{dino_head_forward.2} parent=5 // pred_region
        // Predicated region
        $region33: #{dino_head_forward.2} parent=31 // pred_check
          %p244 = pneg %p60
        $region34: #{dino_head_forward.2} parent=31 // pred_check_branch
          %246 = sbr.rel (%p244) target = $region36
        $region35: #{dino_head_forward.2} parent=31 // pred_region
          %s247 = sand.u32 %s50, 1
          %s248 = scalar_lea.sflag [#allocation4], %s247
          %s249 = sand.u32 %s50, 1
          %s250 = smul.addr %s249, 64
          %s251 = scalar_lea.vmem [#allocation3], %s250
          %253 = vsyncadd %s248, 0
          %s254 = smul.addr %s19, 4
          %s255 = scalar_lea.hbm %s1, %s254
          %s256 = sshll.u32 %s255, 4
          %s257 = int_to_ptr.hbm [resolvable:$true] %s256
          %s258 = sshll.u32 %s251, 4
          %s259 = int_to_ptr.vmem [resolvable:$true] %s258
          %264 = dma.hbm_to_vmem [thread:$0]  %s257, 1024, %s259, %s248, 128, 64, 4
        $region36: #{dino_head_forward.2} parent=31 // pred_fallthru
          _
        // Predicated region
        $region37: #{dino_head_forward.2} parent=31 // pred_check
          %p265 = pneg %p86
        $region38: #{dino_head_forward.2} parent=31 // pred_check_branch
          %267 = sbr.rel (%p265) target = $region40
        $region39: #{dino_head_forward.2} parent=31 // pred_region
          %p268 = scmp.lt.s32.totalorder %s19, 1
          %s269 = scalar_select %p268, %s19, 1
          %s270 = scalar_lea.vmem %s2, %s269
        $region40: #{dino_head_forward.2} parent=31 // pred_fallthru
          _
        // Predicated region
        $region41: #{dino_head_forward.2} parent=31 // pred_check
          %p271 = pneg %p112
        $region42: #{dino_head_forward.2} parent=31 // pred_check_branch
          %273 = sbr.rel (%p271) target = $region44
        $region43: #{dino_head_forward.2} parent=31 // pred_region
          %s274 = sand.u32 %s19, 1
          %s275 = scalar_lea.sflag [#allocation6], %s274
          %s276 = sand.u32 %s102, 1
          %s277 = smul.addr %s276, 128
          %s278 = scalar_lea.vmem [#allocation5], %s277
          %s279 = smul.u32 16, %s19
          %281 = vsyncadd %s275, 0
          %s282 = smul.addr %s279, 2
          %s283 = smul.addr %s282, 4
          %s284 = scalar_lea.hbm %s3, %s283
          %s285 = sshll.u32 %s284, 4
          %s286 = int_to_ptr.hbm [resolvable:$true] %s285
          %s287 = sshll.u32 %s278, 4
          %s288 = int_to_ptr.vmem [resolvable:$true] %s287
          %293 = dma.hbm_to_vmem [thread:$0]  %s286, 2048, %s288, %s275, 128, 128, 8
        $region44: #{dino_head_forward.2} parent=31 // pred_fallthru
          _
      $region32: #{dino_head_forward.2} parent=5 // pred_fallthru
        _
      %p294 = scmp.le.s32.totalorder 1, %s19
      %p295 = scmp.lt.s32.totalorder %s19, 3
      %p296 = pnand %p294, %p295
      %p297 = pneg %p296
      // Predicated region
      $region45: #{dino_head_forward.2} parent=5 // pred_check
        _
      $region46: #{dino_head_forward.2} parent=5 // pred_check_branch
        %299 = sbr.rel (%p296) target = $region48
      $region47: #{dino_head_forward.2} parent=5 // pred_region
        %s300 = ssub.s32 %s19, 1
        %s301 = sand.u32 %s53, 1
        %s302 = scalar_lea.sflag [#allocation4], %s301
        %s303 = sand.u32 %s53, 1
        %s304 = smul.addr %s303, 64
        %s305 = scalar_lea.vmem [#allocation3], %s304
        // Predicated region
        $region49: #{dino_head_forward.2} parent=47 // pred_check
          %p306 = pneg %p66
        $region50: #{dino_head_forward.2} parent=47 // pred_check_branch
          %308 = sbr.rel (%p306) target = $region52
        $region51: #{dino_head_forward.2} parent=47 // pred_region
          %310 = dma.done %s302, 1024
        $region52: #{dino_head_forward.2} parent=47 // pred_fallthru
          _
        %s311 = sand.u32 %s24, 1
        %s312 = scalar_lea.sflag [#allocation6], %s311
        %s313 = sand.u32 %s105, 1
        %s314 = smul.addr %s313, 128
        %s315 = scalar_lea.vmem [#allocation5], %s314
        // Predicated region
        $region53: #{dino_head_forward.2} parent=47 // pred_check
          %p316 = pneg %p118
        $region54: #{dino_head_forward.2} parent=47 // pred_check_branch
          %318 = sbr.rel (%p316) target = $region56
        $region55: #{dino_head_forward.2} parent=47 // pred_region
          %320 = dma.done %s312, 2048
        $region56: #{dino_head_forward.2} parent=47 // pred_fallthru
          _
        // Predicated region
        $region57: #{dino_head_forward.2} parent=47 // pred_check
          %p321 = pneg %p160
        $region58: #{dino_head_forward.2} parent=47 // pred_check_branch
          %323 = sbr.rel (%p321) target = $region60
        $region59: #{dino_head_forward.2} parent=47 // pred_region
          %325 = dma.done [#allocation6], 2048
        $region60: #{dino_head_forward.2} parent=47 // pred_fallthru
          _
        %p326 = pneg %p40
        %p327 = pneg %p37
        %s328 = sand.u32 %s53, 1
        %s329 = scalar_lea.sflag [#allocation4], %s328
        %s330 = sand.u32 %s53, 1
        %s331 = smul.addr %s330, 64
        %s332 = scalar_lea.vmem [#allocation3], %s331
        %p333 = pneg %p66
        %p334 = pneg %p63
        %p335 = scmp.lt.s32.totalorder %s24, 1
        %s336 = scalar_select %p335, %s24, 1
        %s337 = scalar_lea.vmem %s2, %s336
        %p338 = pneg %p92
        %p339 = pneg %p89
        %s340 = sand.u32 %s24, 1
        %s341 = scalar_lea.sflag [#allocation6], %s340
        %s342 = sand.u32 %s105, 1
        %s343 = smul.addr %s342, 128
        %s344 = scalar_lea.vmem [#allocation5], %s343
        %p345 = pneg %p118
        %p346 = pneg %p115
        %p347 = pneg %p139
        %p348 = pneg %p136
        %p349 = pneg %p160
        %p350 = pneg %p157
        %p351 = pneg %p181
        %p352 = pneg %p178
        %p353 = pneg %p202
        %p354 = pneg %p199
        %p355 = scmp.lt.s32.totalorder %s24, 1
        %s356 = scalar_select %p355, %s24, 1
        %s357 = scalar_lea.vmem %s2, %s356
        %s358 = smul.u32 16, %s24
        %p359 = scmp.eq.s32.totalorder %s24, 0
        // Predicated region
        $region61: #{dino_head_forward.2} parent=47 // pred_check
          %p360 = pneg %p359
        $region62: #{dino_head_forward.2} parent=47 // pred_check_branch
          %362 = sbr.rel (%p360) target = $region64
        $region63: #{dino_head_forward.2} parent=47 // pred_region
          %363 = vst [vmem:[#allocation2] sm:$0xff] 0.0
          %364 = vst [vmem:[#allocation2 + $0x8] sm:$0xff] 0.0
          %365 = vst [vmem:[#allocation2 + $0x10] sm:$0xff] 0.0
          %366 = vst [vmem:[#allocation2 + $0x18] sm:$0xff] 0.0
        $region64: #{dino_head_forward.2} parent=47 // pred_fallthru
          _
        %v367 = vld [vmem:[%s0] sm:$0xf]
        %v368 = vld [vmem:[%s0 + $0x4] sm:$0xf]
        %v369 = vld [vmem:[%s305] sm:$0xf]
        %v370 = vld [vmem:[%s305 + $0x4] sm:$0xf]
        %v371 = vld [vmem:[%s305 + $0x8] sm:$0xf]
        %v372 = vld [vmem:[%s305 + $0xc] sm:$0xf]
        %v373 = vld [vmem:[%s305 + $0x10] sm:$0xf]
        %v374 = vld [vmem:[%s305 + $0x14] sm:$0xf]
        %v375 = vld [vmem:[%s305 + $0x18] sm:$0xf]
        %v376 = vld [vmem:[%s305 + $0x1c] sm:$0xf]
        %v377 = vld [vmem:[%s305 + $0x20] sm:$0xf]
        %v378 = vld [vmem:[%s305 + $0x24] sm:$0xf]
        %v379 = vld [vmem:[%s305 + $0x28] sm:$0xf]
        %v380 = vld [vmem:[%s305 + $0x2c] sm:$0xf]
        %v381 = vld [vmem:[%s305 + $0x30] sm:$0xf]
        %v382 = vld [vmem:[%s305 + $0x34] sm:$0xf]
        %v383 = vld [vmem:[%s305 + $0x38] sm:$0xf]
        %v384 = vld [vmem:[%s305 + $0x3c] sm:$0xf]
        %v385 = vld [vmem:[%s357] sm:$0x1]
        %v387 = vperm.slane %v385, 0
        %v391 = vunpack.c.l.b16 %v367
        %v392 = vunpack.c.l.b16 %v368
        %v393 = vpack.c.b16 %v392, %v391
        %v411 = vunpack.c.l.b16 %v369
        %v412 = vunpack.c.l.b16 %v370
        %v413 = vunpack.c.l.b16 %v371
        %v414 = vunpack.c.l.b16 %v372
        %v415 = vunpack.c.l.b16 %v373
        %v416 = vunpack.c.l.b16 %v374
        %v417 = vunpack.c.l.b16 %v375
        %v418 = vunpack.c.l.b16 %v376
        %v419 = vunpack.c.l.b16 %v377
        %v420 = vunpack.c.l.b16 %v378
        %v421 = vunpack.c.l.b16 %v379
        %v422 = vunpack.c.l.b16 %v380
        %v423 = vunpack.c.l.b16 %v381
        %v424 = vunpack.c.l.b16 %v382
        %v425 = vunpack.c.l.b16 %v383
        %v426 = vunpack.c.l.b16 %v384
        %v427 = vpack.c.b16 %v412, %v411
        %v428 = vpack.c.b16 %v414, %v413
        %v429 = vpack.c.b16 %v416, %v415
        %v430 = vpack.c.b16 %v418, %v417
        %v431 = vpack.c.b16 %v420, %v419
        %v432 = vpack.c.b16 %v422, %v421
        %v433 = vpack.c.b16 %v424, %v423
        %v434 = vpack.c.b16 %v426, %v425
        %443 = vmatpush.bf16.msra.mxu0 %v434
        %444 = vmatpush.bf16.msra.mxu0 %v433
        %445 = vmatpush.bf16.msra.mxu0 %v432
        %446 = vmatpush.bf16.msra.mxu0 %v431
        %447 = vmatpush.bf16.msra.mxu0 %v430
        %448 = vmatpush.bf16.msra.mxu0 %v429
        %449 = vmatpush.bf16.msra.mxu0 %v428
        %450 = vmatpush.bf16.msra.mxu0 %v427
        %451 = vmatmul.bf16.gmra.mxu0 %v393
        %v452 = vpop.f32.mrf.mxu0
        %v453 = vadd.f32 %v387, %v452
        %v454 = vpop.f32.mrf.mxu0
        %v455 = vadd.f32 %v387, %v454
        %456 = vdwg.mxu0
        %v457 = vadd.f32 %v453, %v455
        %v458 = vrot.slane %v457, 4
        %v459 = vadd.f32 %v457, %v458
        %v460 = vrot.slane %v459, 2
        %v461 = vadd.f32 %v459, %v460
        %v462 = vrot.slane %v461, 1
        %v463 = vadd.f32 %v461, %v462
        %v464 = vrcp.pop 16.0
        %v465 = vmul.f32 16.0, %v464
        %v466 = vsub.f32 1.0, %v465
        %v467 = vmul.f32 %v464, %v466
        %v468 = vadd.f32 %v464, %v467
        %vm469 = vweird.f32 %v464
        %v470 = vsel %vm469, %v464, %v468
        %v471 = vmul.f32 %v463, %v470
        %v472 = vsub.f32 %v453, %v471
        %v473 = vsub.f32 %v455, %v471
        %v474 = vmul.f32 %v472, %v472
        %v475 = vmul.f32 %v473, %v473
        %v476 = vadd.f32 %v474, %v475
        %v477 = vrot.slane %v476, 4
        %v478 = vadd.f32 %v476, %v477
        %v479 = vrot.slane %v478, 2
        %v480 = vadd.f32 %v478, %v479
        %v481 = vrot.slane %v480, 1
        %v482 = vadd.f32 %v480, %v481
        %v483 = vmul.f32 %v482, %v470
        %v484 = vadd.f32 %v483, 1e-05
        %v485 = vrsqrt.pop %v484
        %v486 = vmul.f32 %v485, %v484
        %v487 = vmul.f32 %v486, %v485
        %v488 = vmul.f32 0.5, %v487
        %v489 = vsub.f32 1.5, %v488
        %v490 = vmul.f32 %v485, %v489
        %vm491 = vweird.f32 %v484
        %vm492 = vweird.f32 %v485
        %vm493 = vmor %vm491, %vm492
        %v494 = vsel %vm493, %v485, %v490
        %v495 = vmul.f32 %v472, %v494
        %v496 = vmul.f32 %v473, %v494
        %v497 = vmul.f32 %v495, 0.5
        %v498 = vmul.f32 %v496, 0.5
        %v499 = vmul.f32 %v495, 0.70710677
        %v500 = vmul.f32 %v496, 0.70710677
        %v501 = vmul.f32 %v499, %v499
        %v502 = vmin.f32 16.0, %v501
        %v503 = vmul.f32 %v502, 2.1237322e-06
        %v504 = vadd.f32 %v503, 0.00028619796
        %v505 = vmul.f32 %v502, %v504
        %v506 = vadd.f32 %v505, 0.0036580483
        %v507 = vmul.f32 %v502, %v506
        %v508 = vadd.f32 %v507, 0.05243302
        %v509 = vmul.f32 %v502, %v508
        %v510 = vadd.f32 %v509, 0.18741608
        %v511 = vmul.f32 %v502, %v510
        %v512 = vadd.f32 %v511, 1.1283791
        %v513 = vmul.f32 %v499, %v512
        %v514 = vmul.f32 %v502, 3.8918573e-05
        %v515 = vadd.f32 %v514, 0.001143296
        %v516 = vmul.f32 %v502, %v515
        %v517 = vadd.f32 %v516, 0.014752088
        %v518 = vmul.f32 %v502, %v517
        %v519 = vadd.f32 %v518, 0.112945676
        %v520 = vmul.f32 %v502, %v519
        %v521 = vadd.f32 %v520, 0.4994258
        %v522 = vmul.f32 %v502, %v521
        %v523 = vadd.f32 %v522, 1.0
        %v524 = vrcp.pop %v523
        %v525 = vmul.f32 %v523, %v524
        %v526 = vsub.f32 1.0, %v525
        %v527 = vmul.f32 %v524, %v526
        %v528 = vadd.f32 %v524, %v527
        %vm529 = vweird.f32 %v523
        %vm530 = vweird.f32 %v524
        %vm531 = vmor %vm529, %vm530
        %v532 = vsel %vm531, %v524, %v528
        %v533 = vand.u32 2147483647, %v523
        %vm534 = vcmp.eq.f32.partialorder %v533, 8.507059e+37
        %v535 = vand.u32 %v523, 2147483648
        %v536 = vor.u32 1.1754944e-38, %v535
        %v537 = vsel %vm534, %v536, %v532
        %v538 = vmul.f32 %v513, %v537
        %v539 = vmin.f32 %v538, 1.0
        %v540 = vmax.f32 %v539, -1.0
        %v541 = vmul.f32 %v500, %v500
        %v542 = vmin.f32 16.0, %v541
        %v543 = vmul.f32 %v542, 2.1237322e-06
        %v544 = vadd.f32 %v543, 0.00028619796
        %v545 = vmul.f32 %v542, %v544
        %v546 = vadd.f32 %v545, 0.0036580483
        %v547 = vmul.f32 %v542, %v546
        %v548 = vadd.f32 %v547, 0.05243302
        %v549 = vmul.f32 %v542, %v548
        %v550 = vadd.f32 %v549, 0.18741608
        %v551 = vmul.f32 %v542, %v550
        %v552 = vadd.f32 %v551, 1.1283791
        %v553 = vmul.f32 %v500, %v552
        %v554 = vmul.f32 %v542, 3.8918573e-05
        %v555 = vadd.f32 %v554, 0.001143296
        %v556 = vmul.f32 %v542, %v555
        %v557 = vadd.f32 %v556, 0.014752088
        %v558 = vmul.f32 %v542, %v557
        %v559 = vadd.f32 %v558, 0.112945676
        %v560 = vmul.f32 %v542, %v559
        %v561 = vadd.f32 %v560, 0.4994258
        %v562 = vmul.f32 %v542, %v561
        %v563 = vadd.f32 %v562, 1.0
        %v564 = vrcp.pop %v563
        %v565 = vmul.f32 %v563, %v564
        %v566 = vsub.f32 1.0, %v565
        %v567 = vmul.f32 %v564, %v566
        %v568 = vadd.f32 %v564, %v567
        %vm569 = vweird.f32 %v563
        %vm570 = vweird.f32 %v564
        %vm571 = vmor %vm569, %vm570
        %v572 = vsel %vm571, %v564, %v568
        %v573 = vand.u32 2147483647, %v563
        %vm574 = vcmp.eq.f32.partialorder %v573, 8.507059e+37
        %v575 = vand.u32 %v563, 2147483648
        %v576 = vor.u32 1.1754944e-38, %v575
        %v577 = vsel %vm574, %v576, %v572
        %v578 = vmul.f32 %v553, %v577
        %v579 = vmin.f32 %v578, 1.0
        %v580 = vmax.f32 %v579, -1.0
        %v581 = vadd.f32 %v540, 1.0
        %v582 = vadd.f32 %v580, 1.0
        %v583 = vmul.f32 %v497, %v581
        %v584 = vmul.f32 %v498, %v582
        %v585 = vld [vmem:[#allocation2] sm:$0xff]
        %v586 = vld [vmem:[#allocation2 + $0x8] sm:$0xff]
        %v587 = vld [vmem:[#allocation2 + $0x10] sm:$0xff]
        %v588 = vld [vmem:[#allocation2 + $0x18] sm:$0xff]
        %v589 = vpack.c.bf16 %v584, %v583
        %v590 = vld [vmem:[%s315] sm:$0xff]
        %v591 = vld [vmem:[%s315 + $0x8] sm:$0xff]
        %v592 = vld [vmem:[%s315 + $0x10] sm:$0xff]
        %v593 = vld [vmem:[%s315 + $0x18] sm:$0xff]
        %v594 = vld [vmem:[%s315 + $0x20] sm:$0xff]
        %v595 = vld [vmem:[%s315 + $0x28] sm:$0xff]
        %v596 = vld [vmem:[%s315 + $0x30] sm:$0xff]
        %v597 = vld [vmem:[%s315 + $0x38] sm:$0xff]
        %v598 = vld [vmem:[%s315 + $0x40] sm:$0xff]
        %v599 = vld [vmem:[%s315 + $0x48] sm:$0xff]
        %v600 = vld [vmem:[%s315 + $0x50] sm:$0xff]
        %v601 = vld [vmem:[%s315 + $0x58] sm:$0xff]
        %v602 = vld [vmem:[%s315 + $0x60] sm:$0xff]
        %v603 = vld [vmem:[%s315 + $0x68] sm:$0xff]
        %v604 = vld [vmem:[%s315 + $0x70] sm:$0xff]
        %v605 = vld [vmem:[%s315 + $0x78] sm:$0xff]
        %v622 = vunpack.c.l.b16 %v590
        %v623 = vunpack.c.h.b16 %v590
        %v624 = vunpack.c.l.b16 %v591
        %v625 = vunpack.c.h.b16 %v591
        %v626 = vunpack.c.l.b16 %v592
        %v627 = vunpack.c.h.b16 %v592
        %v628 = vunpack.c.l.b16 %v593
        %v629 = vunpack.c.h.b16 %v593
        %v630 = vunpack.c.l.b16 %v594
        %v631 = vunpack.c.h.b16 %v594
        %v632 = vunpack.c.l.b16 %v595
        %v633 = vunpack.c.h.b16 %v595
        %v634 = vunpack.c.l.b16 %v596
        %v635 = vunpack.c.h.b16 %v596
        %v636 = vunpack.c.l.b16 %v597
        %v637 = vunpack.c.h.b16 %v597
        %v638 = vunpack.c.l.b16 %v598
        %v639 = vunpack.c.h.b16 %v598
        %v640 = vunpack.c.l.b16 %v599
        %v641 = vunpack.c.h.b16 %v599
        %v642 = vunpack.c.l.b16 %v600
        %v643 = vunpack.c.h.b16 %v600
        %v644 = vunpack.c.l.b16 %v601
        %v645 = vunpack.c.h.b16 %v601
        %v646 = vunpack.c.l.b16 %v602
        %v647 = vunpack.c.h.b16 %v602
        %v648 = vunpack.c.l.b16 %v603
        %v649 = vunpack.c.h.b16 %v603
        %v650 = vunpack.c.l.b16 %v604
        %v651 = vunpack.c.h.b16 %v604
        %v652 = vunpack.c.l.b16 %v605
        %v653 = vunpack.c.h.b16 %v605
        %v654 = vpack.c.b16 %v624, %v622
        %v655 = vpack.c.b16 %v625, %v623
        %v656 = vpack.c.b16 %v628, %v626
        %v657 = vpack.c.b16 %v629, %v627
        %v658 = vpack.c.b16 %v632, %v630
        %v659 = vpack.c.b16 %v633, %v631
        %v660 = vpack.c.b16 %v636, %v634
        %v661 = vpack.c.b16 %v637, %v635
        %v662 = vpack.c.b16 %v640, %v638
        %v663 = vpack.c.b16 %v641, %v639
        %v664 = vpack.c.b16 %v644, %v642
        %v665 = vpack.c.b16 %v645, %v643
        %v666 = vpack.c.b16 %v648, %v646
        %v667 = vpack.c.b16 %v649, %v647
        %v668 = vpack.c.b16 %v652, %v650
        %v669 = vpack.c.b16 %v653, %v651
        %686 = vmatpush.bf16.msra.mxu0 %v668
        %687 = vmatpush.bf16.msra.mxu0 %v666
        %688 = vmatpush.bf16.msra.mxu0 %v664
        %689 = vmatpush.bf16.msra.mxu0 %v662
        %690 = vmatpush.bf16.msra.mxu0 %v660
        %691 = vmatpush.bf16.msra.mxu0 %v658
        %692 = vmatpush.bf16.msra.mxu0 %v656
        %693 = vmatpush.bf16.msra.mxu0 %v654
        %694 = vmatmul.bf16.gmra.mxu0 %v589
        %v695 = vpop.f32.mrf.mxu0
        %v696 = vadd.f32 0.0, %v695
        %v697 = vpop.f32.mrf.mxu0
        %v698 = vadd.f32 0.0, %v697
        %699 = vdwg.mxu0
        %700 = vmatpush.bf16.msra.mxu0 %v669
        %701 = vmatpush.bf16.msra.mxu0 %v667
        %702 = vmatpush.bf16.msra.mxu0 %v665
        %703 = vmatpush.bf16.msra.mxu0 %v663
        %704 = vmatpush.bf16.msra.mxu0 %v661
        %705 = vmatpush.bf16.msra.mxu0 %v659
        %706 = vmatpush.bf16.msra.mxu0 %v657
        %707 = vmatpush.bf16.msra.mxu0 %v655
        %708 = vmatmul.bf16.gmra.mxu0 %v589
        %v709 = vpop.f32.mrf.mxu0
        %v710 = vadd.f32 0.0, %v709
        %v711 = vpop.f32.mrf.mxu0
        %v712 = vadd.f32 0.0, %v711
        %713 = vdwg.mxu0
        %v714 = vadd.f32 %v585, %v696
        %v715 = vadd.f32 %v586, %v710
        %v716 = vadd.f32 %v587, %v698
        %v717 = vadd.f32 %v588, %v712
        %718 = vst [vmem:[#allocation2] sm:$0xff] %v714
        %719 = vst [vmem:[#allocation2 + $0x8] sm:$0xff] %v715
        %720 = vst [vmem:[#allocation2 + $0x10] sm:$0xff] %v716
        %721 = vst [vmem:[#allocation2 + $0x18] sm:$0xff] %v717
        %p722 = scmp.eq.s32.totalorder %s24, 1
        // Predicated region
        $region65: #{dino_head_forward.2} parent=47 // pred_check
          %p723 = pneg %p722
        $region66: #{dino_head_forward.2} parent=47 // pred_check_branch
          %725 = sbr.rel (%p723) target = $region68
        $region67: #{dino_head_forward.2} parent=47 // pred_region
          %v726 = vld [vmem:[#allocation2] sm:$0xff]
          %v727 = vld [vmem:[#allocation2 + $0x8] sm:$0xff]
          %v728 = vld [vmem:[#allocation2 + $0x10] sm:$0xff]
          %v729 = vld [vmem:[#allocation2 + $0x18] sm:$0xff]
          %v730 = vld [vmem:[%s4] sm:$0x3]
          %v732 = vperm.slane %v730, 0
          %v733 = vperm.slane %v730, 1
          %v736 = vadd.f32 %v726, %v732
          %v737 = vadd.f32 %v727, %v733
          %v738 = vadd.f32 %v728, %v732
          %v739 = vadd.f32 %v729, %v733
          %v740 = vadd.f32 %v736, %v738
          %v741 = vrot.slane %v740, 4
          %v742 = vadd.f32 %v740, %v741
          %v743 = vrot.slane %v742, 2
          %v744 = vadd.f32 %v742, %v743
          %v745 = vrot.slane %v744, 1
          %v746 = vadd.f32 %v744, %v745
          %v747 = vadd.f32 %v737, %v739
          %v748 = vrot.slane %v747, 4
          %v749 = vadd.f32 %v747, %v748
          %v750 = vrot.slane %v749, 2
          %v751 = vadd.f32 %v749, %v750
          %v752 = vrot.slane %v751, 1
          %v753 = vadd.f32 %v751, %v752
          %v754 = vmul.f32 %v746, %v470
          %v755 = vmul.f32 %v753, %v470
          %v756 = vsub.f32 %v736, %v754
          %v757 = vsub.f32 %v737, %v755
          %v758 = vsub.f32 %v738, %v754
          %v759 = vsub.f32 %v739, %v755
          %v760 = vmul.f32 %v756, %v756
          %v761 = vmul.f32 %v757, %v757
          %v762 = vmul.f32 %v758, %v758
          %v763 = vmul.f32 %v759, %v759
          %v764 = vadd.f32 %v760, %v762
          %v765 = vrot.slane %v764, 4
          %v766 = vadd.f32 %v764, %v765
          %v767 = vrot.slane %v766, 2
          %v768 = vadd.f32 %v766, %v767
          %v769 = vrot.slane %v768, 1
          %v770 = vadd.f32 %v768, %v769
          %v771 = vadd.f32 %v761, %v763
          %v772 = vrot.slane %v771, 4
          %v773 = vadd.f32 %v771, %v772
          %v774 = vrot.slane %v773, 2
          %v775 = vadd.f32 %v773, %v774
          %v776 = vrot.slane %v775, 1
          %v777 = vadd.f32 %v775, %v776
          %v778 = vmul.f32 %v770, %v470
          %v779 = vmul.f32 %v777, %v470
          %v780 = vadd.f32 %v778, 1e-05
          %v781 = vadd.f32 %v779, 1e-05
          %v782 = vrsqrt.pop %v780
          %v783 = vmul.f32 %v782, %v780
          %v784 = vmul.f32 %v783, %v782
          %v785 = vmul.f32 0.5, %v784
          %v786 = vsub.f32 1.5, %v785
          %v787 = vmul.f32 %v782, %v786
          %vm788 = vweird.f32 %v780
          %vm789 = vweird.f32 %v782
          %vm790 = vmor %vm788, %vm789
          %v791 = vsel %vm790, %v782, %v787
          %v792 = vrsqrt.pop %v781
          %v793 = vmul.f32 %v792, %v781
          %v794 = vmul.f32 %v793, %v792
          %v795 = vmul.f32 0.5, %v794
          %v796 = vsub.f32 1.5, %v795
          %v797 = vmul.f32 %v792, %v796
          %vm798 = vweird.f32 %v781
          %vm799 = vweird.f32 %v792
          %vm800 = vmor %vm798, %vm799
          %v801 = vsel %vm800, %v792, %v797
          %v802 = vmul.f32 %v756, %v791
          %v803 = vmul.f32 %v757, %v801
          %v804 = vmul.f32 %v758, %v791
          %v805 = vmul.f32 %v759, %v801
          %v806 = vmul.f32 %v802, 0.5
          %v807 = vmul.f32 %v803, 0.5
          %v808 = vmul.f32 %v804, 0.5
          %v809 = vmul.f32 %v805, 0.5
          %v810 = vmul.f32 %v802, 0.70710677
          %v811 = vmul.f32 %v803, 0.70710677
          %v812 = vmul.f32 %v804, 0.70710677
          %v813 = vmul.f32 %v805, 0.70710677
          %v814 = vmul.f32 %v810, %v810
          %v815 = vmin.f32 16.0, %v814
          %v816 = vmul.f32 %v815, 2.1237322e-06
          %v817 = vadd.f32 %v816, 0.00028619796
          %v818 = vmul.f32 %v815, %v817
          %v819 = vadd.f32 %v818, 0.0036580483
          %v820 = vmul.f32 %v815, %v819
          %v821 = vadd.f32 %v820, 0.05243302
          %v822 = vmul.f32 %v815, %v821
          %v823 = vadd.f32 %v822, 0.18741608
          %v824 = vmul.f32 %v815, %v823
          %v825 = vadd.f32 %v824, 1.1283791
          %v826 = vmul.f32 %v810, %v825
          %v827 = vmul.f32 %v815, 3.8918573e-05
          %v828 = vadd.f32 %v827, 0.001143296
          %v829 = vmul.f32 %v815, %v828
          %v830 = vadd.f32 %v829, 0.014752088
          %v831 = vmul.f32 %v815, %v830
          %v832 = vadd.f32 %v831, 0.112945676
          %v833 = vmul.f32 %v815, %v832
          %v834 = vadd.f32 %v833, 0.4994258
          %v835 = vmul.f32 %v815, %v834
          %v836 = vadd.f32 %v835, 1.0
          %v837 = vrcp.pop %v836
          %v838 = vmul.f32 %v836, %v837
          %v839 = vsub.f32 1.0, %v838
          %v840 = vmul.f32 %v837, %v839
          %v841 = vadd.f32 %v837, %v840
          %vm842 = vweird.f32 %v836
          %vm843 = vweird.f32 %v837
          %vm844 = vmor %vm842, %vm843
          %v845 = vsel %vm844, %v837, %v841
          %v846 = vand.u32 2147483647, %v836
          %vm847 = vcmp.eq.f32.partialorder %v846, 8.507059e+37
          %v848 = vand.u32 %v836, 2147483648
          %v849 = vor.u32 1.1754944e-38, %v848
          %v850 = vsel %vm847, %v849, %v845
          %v851 = vmul.f32 %v826, %v850
          %v852 = vmin.f32 %v851, 1.0
          %v853 = vmax.f32 %v852, -1.0
          %v854 = vmul.f32 %v811, %v811
          %v855 = vmin.f32 16.0, %v854
          %v856 = vmul.f32 %v855, 2.1237322e-06
          %v857 = vadd.f32 %v856, 0.00028619796
          %v858 = vmul.f32 %v855, %v857
          %v859 = vadd.f32 %v858, 0.0036580483
          %v860 = vmul.f32 %v855, %v859
          %v861 = vadd.f32 %v860, 0.05243302
          %v862 = vmul.f32 %v855, %v861
          %v863 = vadd.f32 %v862, 0.18741608
          %v864 = vmul.f32 %v855, %v863
          %v865 = vadd.f32 %v864, 1.1283791
          %v866 = vmul.f32 %v811, %v865
          %v867 = vmul.f32 %v855, 3.8918573e-05
          %v868 = vadd.f32 %v867, 0.001143296
          %v869 = vmul.f32 %v855, %v868
          %v870 = vadd.f32 %v869, 0.014752088
          %v871 = vmul.f32 %v855, %v870
          %v872 = vadd.f32 %v871, 0.112945676
          %v873 = vmul.f32 %v855, %v872
          %v874 = vadd.f32 %v873, 0.4994258
          %v875 = vmul.f32 %v855, %v874
          %v876 = vadd.f32 %v875, 1.0
          %v877 = vrcp.pop %v876
          %v878 = vmul.f32 %v876, %v877
          %v879 = vsub.f32 1.0, %v878
          %v880 = vmul.f32 %v877, %v879
          %v881 = vadd.f32 %v877, %v880
          %vm882 = vweird.f32 %v876
          %vm883 = vweird.f32 %v877
          %vm884 = vmor %vm882, %vm883
          %v885 = vsel %vm884, %v877, %v881
          %v886 = vand.u32 2147483647, %v876
          %vm887 = vcmp.eq.f32.partialorder %v886, 8.507059e+37
          %v888 = vand.u32 %v876, 2147483648
          %v889 = vor.u32 1.1754944e-38, %v888
          %v890 = vsel %vm887, %v889, %v885
          %v891 = vmul.f32 %v866, %v890
          %v892 = vmin.f32 %v891, 1.0
          %v893 = vmax.f32 %v892, -1.0
          %v894 = vmul.f32 %v812, %v812
          %v895 = vmin.f32 16.0, %v894
          %v896 = vmul.f32 %v895, 2.1237322e-06
          %v897 = vadd.f32 %v896, 0.00028619796
          %v898 = vmul.f32 %v895, %v897
          %v899 = vadd.f32 %v898, 0.0036580483
          %v900 = vmul.f32 %v895, %v899
          %v901 = vadd.f32 %v900, 0.05243302
          %v902 = vmul.f32 %v895, %v901
          %v903 = vadd.f32 %v902, 0.18741608
          %v904 = vmul.f32 %v895, %v903
          %v905 = vadd.f32 %v904, 1.1283791
          %v906 = vmul.f32 %v812, %v905
          %v907 = vmul.f32 %v895, 3.8918573e-05
          %v908 = vadd.f32 %v907, 0.001143296
          %v909 = vmul.f32 %v895, %v908
          %v910 = vadd.f32 %v909, 0.014752088
          %v911 = vmul.f32 %v895, %v910
          %v912 = vadd.f32 %v911, 0.112945676
          %v913 = vmul.f32 %v895, %v912
          %v914 = vadd.f32 %v913, 0.4994258
          %v915 = vmul.f32 %v895, %v914
          %v916 = vadd.f32 %v915, 1.0
          %v917 = vrcp.pop %v916
          %v918 = vmul.f32 %v916, %v917
          %v919 = vsub.f32 1.0, %v918
          %v920 = vmul.f32 %v917, %v919
          %v921 = vadd.f32 %v917, %v920
          %vm922 = vweird.f32 %v916
          %vm923 = vweird.f32 %v917
          %vm924 = vmor %vm922, %vm923
          %v925 = vsel %vm924, %v917, %v921
          %v926 = vand.u32 2147483647, %v916
          %vm927 = vcmp.eq.f32.partialorder %v926, 8.507059e+37
          %v928 = vand.u32 %v916, 2147483648
          %v929 = vor.u32 1.1754944e-38, %v928
          %v930 = vsel %vm927, %v929, %v925
          %v931 = vmul.f32 %v906, %v930
          %v932 = vmin.f32 %v931, 1.0
          %v933 = vmax.f32 %v932, -1.0
          %v934 = vmul.f32 %v813, %v813
          %v935 = vmin.f32 16.0, %v934
          %v936 = vmul.f32 %v935, 2.1237322e-06
          %v937 = vadd.f32 %v936, 0.00028619796
          %v938 = vmul.f32 %v935, %v937
          %v939 = vadd.f32 %v938, 0.0036580483
          %v940 = vmul.f32 %v935, %v939
          %v941 = vadd.f32 %v940, 0.05243302
          %v942 = vmul.f32 %v935, %v941
          %v943 = vadd.f32 %v942, 0.18741608
          %v944 = vmul.f32 %v935, %v943
          %v945 = vadd.f32 %v944, 1.1283791
          %v946 = vmul.f32 %v813, %v945
          %v947 = vmul.f32 %v935, 3.8918573e-05
          %v948 = vadd.f32 %v947, 0.001143296
          %v949 = vmul.f32 %v935, %v948
          %v950 = vadd.f32 %v949, 0.014752088
          %v951 = vmul.f32 %v935, %v950
          %v952 = vadd.f32 %v951, 0.112945676
          %v953 = vmul.f32 %v935, %v952
          %v954 = vadd.f32 %v953, 0.4994258
          %v955 = vmul.f32 %v935, %v954
          %v956 = vadd.f32 %v955, 1.0
          %v957 = vrcp.pop %v956
          %v958 = vmul.f32 %v956, %v957
          %v959 = vsub.f32 1.0, %v958
          %v960 = vmul.f32 %v957, %v959
          %v961 = vadd.f32 %v957, %v960
          %vm962 = vweird.f32 %v956
          %vm963 = vweird.f32 %v957
          %vm964 = vmor %vm962, %vm963
          %v965 = vsel %vm964, %v957, %v961
          %v966 = vand.u32 2147483647, %v956
          %vm967 = vcmp.eq.f32.partialorder %v966, 8.507059e+37
          %v968 = vand.u32 %v956, 2147483648
          %v969 = vor.u32 1.1754944e-38, %v968
          %v970 = vsel %vm967, %v969, %v965
          %v971 = vmul.f32 %v946, %v970
          %v972 = vmin.f32 %v971, 1.0
          %v973 = vmax.f32 %v972, -1.0
          %v974 = vadd.f32 %v853, 1.0
          %v975 = vadd.f32 %v893, 1.0
          %v976 = vadd.f32 %v933, 1.0
          %v977 = vadd.f32 %v973, 1.0
          %v978 = vmul.f32 %v806, %v974
          %v979 = vmul.f32 %v807, %v975
          %v980 = vmul.f32 %v808, %v976
          %v981 = vmul.f32 %v809, %v977
          %v982 = vpack.c.bf16 %v980, %v978
          %v983 = vpack.c.bf16 %v981, %v979
          %v984 = vld [vmem:[#allocation7] sm:$0xf]
          %v985 = vld [vmem:[#allocation7 + $0x4] sm:$0xf]
          %v986 = vld [vmem:[#allocation7 + $0x8] sm:$0xf]
          %v987 = vld [vmem:[#allocation7 + $0xc] sm:$0xf]
          %v988 = vld [vmem:[#allocation7 + $0x10] sm:$0xf]
          %v989 = vld [vmem:[#allocation7 + $0x14] sm:$0xf]
          %v990 = vld [vmem:[#allocation7 + $0x18] sm:$0xf]
          %v991 = vld [vmem:[#allocation7 + $0x1c] sm:$0xf]
          %v992 = vld [vmem:[#allocation7 + $0x20] sm:$0xf]
          %v993 = vld [vmem:[#allocation7 + $0x24] sm:$0xf]
          %v994 = vld [vmem:[#allocation7 + $0x28] sm:$0xf]
          %v995 = vld [vmem:[#allocation7 + $0x2c] sm:$0xf]
          %v996 = vld [vmem:[#allocation7 + $0x30] sm:$0xf]
          %v997 = vld [vmem:[#allocation7 + $0x34] sm:$0xf]
          %v998 = vld [vmem:[#allocation7 + $0x38] sm:$0xf]
          %v999 = vld [vmem:[#allocation7 + $0x3c] sm:$0xf]
          %v1000 = vld [vmem:[#allocation7 + $0x40] sm:$0xf]
          %v1001 = vld [vmem:[#allocation7 + $0x44] sm:$0xf]
          %v1002 = vld [vmem:[#allocation7 + $0x48] sm:$0xf]
          %v1003 = vld [vmem:[#allocation7 + $0x4c] sm:$0xf]
          %v1004 = vld [vmem:[#allocation7 + $0x50] sm:$0xf]
          %v1005 = vld [vmem:[#allocation7 + $0x54] sm:$0xf]
          %v1006 = vld [vmem:[#allocation7 + $0x58] sm:$0xf]
          %v1007 = vld [vmem:[#allocation7 + $0x5c] sm:$0xf]
          %v1008 = vld [vmem:[#allocation7 + $0x60] sm:$0xf]
          %v1009 = vld [vmem:[#allocation7 + $0x64] sm:$0xf]
          %v1010 = vld [vmem:[#allocation7 + $0x68] sm:$0xf]
          %v1011 = vld [vmem:[#allocation7 + $0x6c] sm:$0xf]
          %v1012 = vld [vmem:[#allocation7 + $0x70] sm:$0xf]
          %v1013 = vld [vmem:[#allocation7 + $0x74] sm:$0xf]
          %v1014 = vld [vmem:[#allocation7 + $0x78] sm:$0xf]
          %v1015 = vld [vmem:[#allocation7 + $0x7c] sm:$0xf]
          %v1016 = vld [vmem:[%s6] sm:$0x1]
          %v1018 = vperm.slane %v1016, 0
          %v1052 = vunpack.c.l.b16 %v984
          %v1053 = vunpack.c.l.b16 %v985
          %v1054 = vunpack.c.l.b16 %v986
          %v1055 = vunpack.c.l.b16 %v987
          %v1056 = vunpack.c.l.b16 %v988
          %v1057 = vunpack.c.l.b16 %v989
          %v1058 = vunpack.c.l.b16 %v990
          %v1059 = vunpack.c.l.b16 %v991
          %v1060 = vunpack.c.l.b16 %v992
          %v1061 = vunpack.c.l.b16 %v993
          %v1062 = vunpack.c.l.b16 %v994
          %v1063 = vunpack.c.l.b16 %v995
          %v1064 = vunpack.c.l.b16 %v996
          %v1065 = vunpack.c.l.b16 %v997
          %v1066 = vunpack.c.l.b16 %v998
          %v1067 = vunpack.c.l.b16 %v999
          %v1068 = vunpack.c.l.b16 %v1000
          %v1069 = vunpack.c.l.b16 %v1001
          %v1070 = vunpack.c.l.b16 %v1002
          %v1071 = vunpack.c.l.b16 %v1003
          %v1072 = vunpack.c.l.b16 %v1004
          %v1073 = vunpack.c.l.b16 %v1005
          %v1074 = vunpack.c.l.b16 %v1006
          %v1075 = vunpack.c.l.b16 %v1007
          %v1076 = vunpack.c.l.b16 %v1008
          %v1077 = vunpack.c.l.b16 %v1009
          %v1078 = vunpack.c.l.b16 %v1010
          %v1079 = vunpack.c.l.b16 %v1011
          %v1080 = vunpack.c.l.b16 %v1012
          %v1081 = vunpack.c.l.b16 %v1013
          %v1082 = vunpack.c.l.b16 %v1014
          %v1083 = vunpack.c.l.b16 %v1015
          %v1084 = vpack.c.b16 %v1053, %v1052
          %v1085 = vpack.c.b16 %v1055, %v1054
          %v1086 = vpack.c.b16 %v1057, %v1056
          %v1087 = vpack.c.b16 %v1059, %v1058
          %v1088 = vpack.c.b16 %v1061, %v1060
          %v1089 = vpack.c.b16 %v1063, %v1062
          %v1090 = vpack.c.b16 %v1065, %v1064
          %v1091 = vpack.c.b16 %v1067, %v1066
          %v1092 = vpack.c.b16 %v1069, %v1068
          %v1093 = vpack.c.b16 %v1071, %v1070
          %v1094 = vpack.c.b16 %v1073, %v1072
          %v1095 = vpack.c.b16 %v1075, %v1074
          %v1096 = vpack.c.b16 %v1077, %v1076
          %v1097 = vpack.c.b16 %v1079, %v1078
          %v1098 = vpack.c.b16 %v1081, %v1080
          %v1099 = vpack.c.b16 %v1083, %v1082
          %1116 = vmatpush.bf16.msra.mxu0 %v1091
          %1117 = vmatpush.bf16.msra.mxu0 %v1090
          %1118 = vmatpush.bf16.msra.mxu0 %v1089
          %1119 = vmatpush.bf16.msra.mxu0 %v1088
          %1120 = vmatpush.bf16.msra.mxu0 %v1087
          %1121 = vmatpush.bf16.msra.mxu0 %v1086
          %1122 = vmatpush.bf16.msra.mxu0 %v1085
          %1123 = vmatpush.bf16.msra.mxu0 %v1084
          %1124 = vmatmul.bf16.gmra.mxu0 %v982
          %v1125 = vpop.f32.mrf.mxu0
          %v1126 = vadd.f32 %v1018, %v1125
          %v1127 = vpop.f32.mrf.mxu0
          %v1128 = vadd.f32 %v1018, %v1127
          %1129 = vdwg.mxu0
          %1130 = vmatpush.bf16.msra.mxu0 %v1099
          %1131 = vmatpush.bf16.msra.mxu0 %v1098
          %1132 = vmatpush.bf16.msra.mxu0 %v1097
          %1133 = vmatpush.bf16.msra.mxu0 %v1096
          %1134 = vmatpush.bf16.msra.mxu0 %v1095
          %1135 = vmatpush.bf16.msra.mxu0 %v1094
          %1136 = vmatpush.bf16.msra.mxu0 %v1093
          %1137 = vmatpush.bf16.msra.mxu0 %v1092
          %1138 = vmatmul.bf16.gmra.mxu0 %v983
          %v1139 = vpop.f32.mrf.mxu0
          %v1140 = vadd.f32 %v1126, %v1139
          %v1141 = vpop.f32.mrf.mxu0
          %v1142 = vadd.f32 %v1128, %v1141
          %1143 = vdwg.mxu0
          %v1144 = vmul.f32 %v1140, %v1140
          %v1145 = vmul.f32 %v1142, %v1142
          %1146 = vadd.xlane.f32.xlu0 %v1144
          %v1147 = vpop.xlane.xlu0 %1146
          %1148 = vadd.xlane.f32.xlu0 %v1145
          %v1149 = vpop.xlane.xlu0 %1148
          %v1150 = vmax.f32 %v1147, 1e-24
          %v1151 = vmax.f32 %v1149, 1e-24
          %v1152 = vrsqrt.pop %v1150
          %v1153 = vmul.f32 %v1152, %v1150
          %v1154 = vmul.f32 %v1153, %v1152
          %v1155 = vmul.f32 0.5, %v1154
          %v1156 = vsub.f32 1.5, %v1155
          %v1157 = vmul.f32 %v1152, %v1156
          %vm1158 = vweird.f32 %v1150
          %vm1159 = vweird.f32 %v1152
          %vm1160 = vmor %vm1158, %vm1159
          %v1161 = vsel %vm1160, %v1152, %v1157
          %v1162 = vrsqrt.pop %v1151
          %v1163 = vmul.f32 %v1162, %v1151
          %v1164 = vmul.f32 %v1163, %v1162
          %v1165 = vmul.f32 0.5, %v1164
          %v1166 = vsub.f32 1.5, %v1165
          %v1167 = vmul.f32 %v1162, %v1166
          %vm1168 = vweird.f32 %v1151
          %vm1169 = vweird.f32 %v1162
          %vm1170 = vmor %vm1168, %vm1169
          %v1171 = vsel %vm1170, %v1162, %v1167
          %v1172 = vmul.f32 %v1140, %v1161
          %v1173 = vmul.f32 %v1142, %v1171
          %v1174 = vpack.c.bf16 %v1172, %v1172
          %v1175 = vpack.c.bf16 %v1173, %v1173
          %1176 = vst [vmem:[%s7] sm:$0xf] %v1174
          %1177 = vst [vmem:[%s7 + $0x4] sm:$0xf] %v1175
        $region68: #{dino_head_forward.2} parent=47 // pred_fallthru
          _
        // Predicated region
        $region69: #{dino_head_forward.2} parent=47 // pred_check
          %p1178 = pneg %p199
        $region70: #{dino_head_forward.2} parent=47 // pred_check_branch
          %1180 = sbr.rel (%p1178) target = $region72
        $region71: #{dino_head_forward.2} parent=47 // pred_region
          _
        $region72: #{dino_head_forward.2} parent=47 // pred_fallthru
          _
        // Predicated region
        $region73: #{dino_head_forward.2} parent=47 // pred_check
          %p1181 = pneg %p199
        $region74: #{dino_head_forward.2} parent=47 // pred_check_branch
          %1183 = sbr.rel (%p1181) target = $region76
        $region75: #{dino_head_forward.2} parent=47 // pred_region
          _
        $region76: #{dino_head_forward.2} parent=47 // pred_fallthru
          _
      $region48: #{dino_head_forward.2} parent=5 // pred_fallthru
        _
      %p1184 = scmp.le.s32.totalorder 2, %s19
      // Predicated region
      $region77: #{dino_head_forward.2} parent=5 // pred_check
        %p1185 = pneg %p1184
      $region78: #{dino_head_forward.2} parent=5 // pred_check_branch
        %1187 = sbr.rel (%p1185) target = $region80
      $region79: #{dino_head_forward.2} parent=5 // pred_region
        %s1188 = ssub.s32 %s19, 2
      $region80: #{dino_head_forward.2} parent=5 // pred_fallthru
        _
    $region6: #{dino_head_forward.2} parent=1 // loop_footer
      %s23 = sadd.s32 1, %s19
    $region7: #{dino_head_forward.2} parent=1 // loop_footer_branch
      %18 = sbr.rel target = $region3
    $region8: #{dino_head_forward.2} parent=1 // loop_exit
      _
    %1189 = vsyncpa [#allocation4], 1
    %s1190 = scalar_lea.sflag [#allocation4], 1
    %1191 = vsyncpa %s1190, 1
    %1192 = vsyncpa [#allocation6], 1
    %s1193 = scalar_lea.sflag [#allocation6], 1
    %1194 = vsyncpa %s1193, 1

</llo_original>
